<compile_context>
chip_gen: v6e
topology: v6e:2x2x1
jax: 0.10.0
libtpu: 0.0.40
codegen_flags: <defaults>
</compile_context>

<pallas_src>
import functools
from math import sqrt

import numpy as np
import jax
import jax.numpy as jnp
from jax import lax
from jax.experimental import pallas as pl
from jax.experimental.pallas import tpu as pltpu


# 40 MiB scoped VMEM: above the 16/32 MiB defaults, below v7x's 64 MiB physical VMEM.
_VMEM_LIMIT = 40 * 1024 * 1024


def _choose_block(dim, requested, align):
    """Largest chunk <= requested that divides `dim` and is `align`-aligned, else `dim`."""
    req = min(requested, dim)
    if req == dim:
        return dim
    if dim % align == 0:
        b = (req // align) * align
        while b >= align:
            if dim % b == 0:
                return b
            b -= align
    return dim


def _choose_group(BH, requested, per_head_bytes, budget=8 * 1024 * 1024):
    """Largest head group <= requested dividing BH whose resident Q block fits `budget`."""
    g = max(1, min(requested, BH))
    while g > 1 and (BH % g != 0 or g * per_head_bytes > budget):
        g -= 1
    return g


# ----------------------------------------------------------------------------
# Kernel 1: sparsity measurement M for every query.
#   M[i] = max_j Q[i].K[idx[i,j]]  -  (sum_j Q[i].K[idx[i,j]]) / L_K
# Q @ K_chunk^T on the MXU for a group of G heads per grid step; the sampled-column
# selection is driven by an int8 multiplicity-count table shared across batch & heads
# (duplicates from sampling-with-replacement preserved via the counts).  Key axis is
# chunked with running max/sum scratch accumulators.
# ----------------------------------------------------------------------------
def _score_kernel(q_ref, k_ref, cnt_ref, m_ref, max_sc, sum_sc, *, L_K, G):
    c = pl.program_id(1)

    @pl.when(c == 0)
    def _init():
        max_sc[...] = jnp.full(max_sc.shape, -jnp.inf, max_sc.dtype)
        sum_sc[...] = jnp.zeros(sum_sc.shape, sum_sc.dtype)

    # Shared per-chunk tables, hoisted out of the per-head loop: multiplicity counts
    # (f32) and an additive "not sampled" bias so the max path is one VALU add.
    cntf = cnt_ref[...].astype(jnp.int32).astype(jnp.float32)            # (L_Q, Tk)
    bias = jnp.where(cntf > 0.5, 0.0, -1e30)                             # (L_Q, Tk)

    for g in range(G):                      # static unroll over the head group
        qk = lax.dot_general(q_ref[g], k_ref[g], (((1,), (1,)), ((), ())),
                             preferred_element_type=jnp.float32)         # (L_Q, Tk)
        max_sc[g] = jnp.maximum(max_sc[g],
                                jnp.max(qk + bias, axis=-1, keepdims=True))
        sum_sc[g] = sum_sc[g] + jnp.sum(qk * cntf, axis=-1, keepdims=True)

    @pl.when(c == pl.num_programs(1) - 1)
    def _finalize():
        m_ref[...] = max_sc[...] - sum_sc[...] * (1.0 / L_K)


def prob_scores(q, k, cnt, *, block_k=512, head_group=8):
    BH, L_Q, D = q.shape
    L_K = k.shape[1]
    tk = _choose_block(L_K, block_k, 128)      # cnt lane dim: 128-aligned or full
    G = _choose_group(BH, head_group, L_Q * D * q.dtype.itemsize)
    grid = (BH // G, L_K // tk)
    return pl.pallas_call(
        functools.partial(_score_kernel, L_K=L_K, G=G),
        out_shape=jax.ShapeDtypeStruct((BH, L_Q, 1), jnp.float32),
        grid_spec=pltpu.PrefetchScalarGridSpec(
            num_scalar_prefetch=0,
            grid=grid,
            in_specs=[
                pl.BlockSpec((G, L_Q, D), lambda i, c: (i, 0, 0)),   # resident per i
                pl.BlockSpec((G, tk, D), lambda i, c: (i, c, 0)),
                pl.BlockSpec((L_Q, tk), lambda i, c: (0, c)),        # shared over heads
            ],
            out_specs=pl.BlockSpec((G, L_Q, 1), lambda i, c: (i, 0, 0)),
            scratch_shapes=[pltpu.VMEM((G, L_Q, 1), jnp.float32),    # running max
                            pltpu.VMEM((G, L_Q, 1), jnp.float32)],   # running sum
        ),
        compiler_params=pltpu.CompilerParams(
            dimension_semantics=("parallel", "arbitrary"),
            vmem_limit_bytes=_VMEM_LIMIT),
    )(q, k, cnt)


# ----------------------------------------------------------------------------
# Kernel 2 (chunked over the key/value sequence axis):
#   * initial context = cumsum(V), built hierarchically per chunk: 128-row sub-blocks
#     of tril @ V on the MXU plus a running column-sum carry (last cumsum row),
#   * online-softmax attention of the u selected queries over key chunks with the
#     ProbMask (k > original query position -> -inf),
#   * chunk-local fused scatter: a selected query whose position lies in this chunk is
#     final after this chunk's update (all later keys are masked), so its normalized
#     row replaces the corresponding cumsum row before the chunk is stored.
# ----------------------------------------------------------------------------
def _attn_kernel(qr_ref, idx_ref, idxl_ref, k_ref, v_ref, tri_ref, ctx_ref,
                 m_sc, l_sc, acc_sc, carry_sc, *, scale, block_kv, sub_block):
    c = pl.program_id(1)

    @pl.when(c == 0)
    def _init():
        m_sc[...] = jnp.full(m_sc.shape, -jnp.inf, m_sc.dtype)
        l_sc[...] = jnp.zeros(l_sc.shape, l_sc.dtype)
        acc_sc[...] = jnp.zeros(acc_sc.shape, acc_sc.dtype)
        carry_sc[...] = jnp.zeros(carry_sc.shape, carry_sc.dtype)

    q = qr_ref[0]                       # (u, D) selected queries
    idx = idx_ref[0]                    # (u, 1) original query positions (sublane)
    idx_l = idxl_ref[0]                 # (1, u) same positions (lane orientation)
    k = k_ref[0]                        # (Tv, D) key chunk
    v = v_ref[0]                        # (Tv, D) value chunk
    tri = tri_ref[...]                  # (SB, SB) lower-tri ones (incl. diag), resident
    u = q.shape[0]
    chunk0 = c * block_kv

    # ---- online softmax over this key chunk (ProbMask: kpos > idx -> -inf) ----------
    s = lax.dot_general(q, k, (((1,), (1,)), ((), ())),
                        preferred_element_type=jnp.float32) * scale      # (u, Tv)
    kpos = chunk0 + lax.broadcasted_iota(jnp.int32, s.shape, 1)
    s = jnp.where(kpos > idx, -jnp.inf, s)
    m_new = jnp.maximum(m_sc[...], jnp.max(s, axis=-1, keepdims=True))
    m_safe = jnp.where(m_new == -jnp.inf, 0.0, m_new)     # guard: fully-masked chunk
    alpha = jnp.exp(m_sc[...] - m_safe)
    p = jnp.exp(s - m_safe)
    l_sc[...] = alpha * l_sc[...] + jnp.sum(p, axis=-1, keepdims=True)
    acc_sc[...] = alpha * acc_sc[...] + jnp.dot(p.astype(v.dtype), v,
                                                preferred_element_type=jnp.float32)
    m_sc[...] = m_new

    # Normalized rows; only queries whose position lies inside this chunk get scattered
    # below (they are final now: every later key is masked out).
    l_inv = pl.reciprocal(jnp.maximum(l_sc[...], 1e-30), approx=True)
    out = (acc_sc[...] * l_inv).astype(v.dtype)                           # (u, D)

    # ---- hierarchical cumsum of V (carry + SB x SB tril on the MXU) + fused scatter --
    for sb in range(block_kv // sub_block):                 # static, small
        r0 = chunk0 + sb * sub_block
        v_sb = v[sb * sub_block:(sb + 1) * sub_block, :]                  # (SB, D)
        ctx_sb = carry_sc[...] + jnp.dot(tri, v_sb,
                                         preferred_element_type=jnp.float32)
        carry_sc[...] = ctx_sb[sub_block - 1:sub_block, :]  # running column sum (last row)

        rows = r0 + lax.broadcasted_iota(jnp.int32, (sub_block, u), 0)
        hit = rows == idx_l                                               # (SB, u)
        onehot = hit.astype(v.dtype)
        sel = jnp.max(hit.astype(jnp.float32), axis=-1, keepdims=True) > 0.5   # (SB, 1)
        scat = jnp.dot(onehot, out, preferred_element_type=jnp.float32)         # (SB, D)
        ctx_sb = jnp.where(sel, scat, ctx_sb)

        start = pl.multiple_of(chunk0 + sb * sub_block, sub_block)
        ctx_ref[0, pl.ds(start, sub_block), :] = ctx_sb.astype(ctx_ref.dtype)


def attn_update(q_reduce, idx, idx_lane, k, v, tri, *, scale, block_kv, out_dtype):
    BH, u, D = q_reduce.shape
    L_V = v.shape[1]
    sub = tri.shape[0]
    grid = (BH, L_V // block_kv)
    return pl.pallas_call(
        functools.partial(_attn_kernel, scale=scale, block_kv=block_kv, sub_block=sub),
        out_shape=jax.ShapeDtypeStruct((BH, L_V, D), out_dtype),
        grid_spec=pltpu.PrefetchScalarGridSpec(
            num_scalar_prefetch=0,
            grid=grid,
            in_specs=[
                pl.BlockSpec((1, u, D), lambda i, c: (i, 0, 0)),
                pl.BlockSpec((1, u, 1), lambda i, c: (i, 0, 0)),
                pl.BlockSpec((1, 1, u), lambda i, c: (i, 0, 0)),
                pl.BlockSpec((1, block_kv, D), lambda i, c: (i, c, 0)),
                pl.BlockSpec((1, block_kv, D), lambda i, c: (i, c, 0)),
                pl.BlockSpec((sub, sub), lambda i, c: (0, 0)),   # resident, DMA'd once
            ],
            out_specs=pl.BlockSpec((1, L_V, D), lambda i, c: (i, 0, 0)),
            scratch_shapes=[
                pltpu.VMEM((u, 1), jnp.float32),   # running max
                pltpu.VMEM((u, 1), jnp.float32),   # running denominator
                pltpu.VMEM((u, D), jnp.float32),   # running numerator
                pltpu.VMEM((1, D), jnp.float32),   # cumsum carry (column sums)
            ],
        ),
        compiler_params=pltpu.CompilerParams(
            dimension_semantics=("parallel", "arbitrary"),
            vmem_limit_bytes=_VMEM_LIMIT),
    )(q_reduce, idx, idx_lane, k, v, tri)


# ----------------------------------------------------------------------------
# Full forward (mask_flag=True, output_attention=False), JAX glue around kernels.
# ----------------------------------------------------------------------------
def prob_attention_forward(queries, keys, values, *, factor=5, scale=None, rng_key,
                           matmul_dtype=jnp.bfloat16, block_k_scores=512,
                           block_kv=512, head_group=8):
    # TODO(synk): only the module's default config (mask_flag=True, output_attention=False)
    # is implemented; dropout is declared but unused in the reference forward and omitted.
    B, L_Q, H, D = queries.shape
    _, L_K, _, _ = keys.shape
    assert L_Q == L_K, "mask_flag=True path requires L_Q == L_V (as in the module)"
    BH = B * H
    out_dtype = values.dtype

    # (B, L, H, D) -> (B*H, L, D); bf16 MXU operands by default (f32 accumulation).
    q = jnp.transpose(queries, (0, 2, 1, 3)).reshape(BH, L_Q, D).astype(matmul_dtype)
    k = jnp.transpose(keys, (0, 2, 1, 3)).reshape(BH, L_K, D).astype(matmul_dtype)
    v = jnp.transpose(values, (0, 2, 1, 3)).reshape(BH, L_K, D).astype(matmul_dtype)

    U_part = min(int(factor * np.ceil(np.log1p(L_K))), L_K)   # sample_k
    u = min(int(factor * np.ceil(np.log1p(L_Q))), L_Q)        # n_top

    # torch.randint(L_K, (L_Q, sample_k)) equivalent, shared across batch & head.
    index_sample = jax.random.randint(rng_key, (L_Q, U_part), 0, L_K)
    # int8 multiplicity counts of the sampled key columns per query row (duplicates
    # from sampling-with-replacement kept); shared over BH.
    assert U_part < 128, "int8 count table requires sample_k < 128"
    cnt = jnp.zeros((L_Q, L_K), jnp.int32).at[
        jnp.arange(L_Q)[:, None], index_sample].add(1).astype(jnp.int8)

    # --- kernel 1: sparsity scores on the MXU, G heads per step, chunked over keys ---
    M = prob_scores(q, k, cnt, block_k=block_k_scores, head_group=head_group)[..., 0]

    # TODO(synk): top-k index selection stays in plain JAX (lax.top_k); no clean
    # vectorized Pallas equivalent for sort/top-k at these shapes.
    _, index = lax.top_k(M, u)                                    # (BH, u) int32

    q_reduce = jnp.take_along_axis(q, index[:, :, None], axis=1)  # (BH, u, D)
    idx = index[:, :, None].astype(jnp.int32)                     # (BH, u, 1) sublane
    idx_lane = index[:, None, :].astype(jnp.int32)                # (BH, 1, u) lane
    scale_val = float(scale) if scale is not None else 1.0 / sqrt(D)

    tv = _choose_block(L_K, block_kv, 8)
    sub = _choose_block(tv, 128, 8)
    tri = jnp.tril(jnp.ones((sub, sub), jnp.float32)).astype(matmul_dtype)

    # --- kernel 2: hierarchical chunked cumsum + masked sparse attention + scatter ---
    ctx = attn_update(q_reduce, idx, idx_lane, k, v, tri,
                      scale=scale_val, block_kv=tv, out_dtype=out_dtype)
    context = ctx.reshape(B, H, L_K, D)
    return jnp.transpose(context, (0, 2, 1, 3)), None             # (B, L_Q, H, D), None


# ----------------------------------------------------------------------------
# Pure-JAX reference (mirrors the PyTorch module) for the correctness check.
# ----------------------------------------------------------------------------
def reference_forward(queries, keys, values, *, factor=5, scale=None, rng_key):
    B, L_Q, H, D = queries.shape
    _, L_K, _, _ = keys.shape
    q = jnp.transpose(queries, (0, 2, 1, 3))
    k = jnp.transpose(keys, (0, 2, 1, 3))
    v = jnp.transpose(values, (0, 2, 1, 3))

    U_part = min(int(factor * np.ceil(np.log1p(L_K))), L_K)
    u = min(int(factor * np.ceil(np.log1p(L_Q))), L_Q)

    index_sample = jax.random.randint(rng_key, (L_Q, U_part), 0, L_K)
    K_sample = k[:, :, index_sample, :]                           # (B,H,L_Q,S,D)
    Q_K_sample = jnp.einsum("bhqd,bhqsd->bhqs", q, K_sample)
    M = Q_K_sample.max(-1) - Q_K_sample.sum(-1) / L_K
    _, index = lax.top_k(M, u)                                    # (B,H,u)

    Q_reduce = jnp.take_along_axis(q, index[..., None], axis=2)
    scores = jnp.einsum("bhud,bhkd->bhuk", Q_reduce, k)
    scale_val = scale if scale is not None else 1.0 / sqrt(D)
    scores = scores * scale_val

    kpos = jnp.arange(L_K)[None, None, None, :]
    masked = jnp.where(kpos > index[..., None], -jnp.inf, scores)
    m = jnp.max(masked, axis=-1, keepdims=True)
    p = jnp.exp(masked - m)
    attn = p / jnp.sum(p, axis=-1, keepdims=True)
    out_top = jnp.einsum("bhuk,bhkd->bhud", attn, v)

    context = jnp.cumsum(v, axis=2)
    b_idx = jnp.arange(B)[:, None, None]
    h_idx = jnp.arange(H)[None, :, None]
    context = context.at[b_idx, h_idx, index].set(out_top)
    return jnp.transpose(context, (0, 2, 1, 3)), None


if __name__ == "__main__":
    key = jax.random.PRNGKey(0)
    kq, kk, kv, ksamp, kq2, kk2, kv2, ksamp2 = jax.random.split(key, 8)

    # ---- Test 1: small shapes, f32 MXU path (single chunk per kernel) ---------------
    B, L, H, D = 2, 16, 4, 32
    queries = jax.random.normal(kq, (B, L, H, D), jnp.float32)
    keys_ = jax.random.normal(kk, (B, L, H, D), jnp.float32)
    values = jax.random.normal(kv, (B, L, H, D), jnp.float32)

    out, _ = prob_attention_forward(queries, keys_, values, rng_key=ksamp,
                                    matmul_dtype=jnp.float32)
    out = jax.block_until_ready(out)
    ref, _ = reference_forward(queries, keys_, values, rng_key=ksamp)
    np.testing.assert_allclose(np.asarray(out), np.asarray(ref), atol=5e-3, rtol=5e-3)

    # ---- Test 2: longer sequence, f32, multi-chunk kernels + head grouping ----------
    B2, L2, H2, D2 = 2, 256, 2, 32
    q2 = jax.random.normal(kq2, (B2, L2, H2, D2), jnp.float32)
    k2 = jax.random.normal(kk2, (B2, L2, H2, D2), jnp.float32)
    v2 = jax.random.normal(kv2, (B2, L2, H2, D2), jnp.float32)

    out2, _ = prob_attention_forward(q2, k2, v2, rng_key=ksamp2,
                                     matmul_dtype=jnp.float32,
                                     block_k_scores=128, block_kv=128, head_group=2)
    out2 = jax.block_until_ready(out2)
    ref2, _ = reference_forward(q2, k2, v2, rng_key=ksamp2)
    np.testing.assert_allclose(np.asarray(out2), np.asarray(ref2), atol=5e-3, rtol=5e-3)

    # ---- Test 3: default bf16 MXU operands + hierarchical cumsum sub-blocks ---------
    q3 = q2.astype(jnp.bfloat16).astype(jnp.float32)
    k3 = k2.astype(jnp.bfloat16).astype(jnp.float32)
    v3 = v2.astype(jnp.bfloat16).astype(jnp.float32)
    out3, _ = prob_attention_forward(q3, k3, v3, rng_key=ksamp2)   # defaults (bf16)
    out3 = jax.block_until_ready(out3)
    ref3, _ = reference_forward(q3, k3, v3, rng_key=ksamp2)
    np.testing.assert_allclose(np.asarray(out3), np.asarray(ref3), atol=3e-2, rtol=3e-2)

    print("KERNEL_OK")
</pallas_src>

<mosaic_0001>
module attributes {stable_mosaic.version = 11 : i64} {
  func.func @_score_kernel(%arg0: i32, %arg1: i32, %arg2: memref<8x16x32xf32, #tpu.memory_space<vmem>>, %arg3: memref<8x16x32xf32, #tpu.memory_space<vmem>>, %arg4: memref<16x16xi8, #tpu.memory_space<vmem>>, %arg5: memref<8x16x1xf32, #tpu.memory_space<vmem>>, %arg6: memref<8x16x1xf32, #tpu.memory_space<vmem>>, %arg7: memref<8x16x1xf32, #tpu.memory_space<vmem>>) attributes {dimension_semantics = [#tpu.dimension_semantics<parallel>, #tpu.dimension_semantics<arbitrary>], iteration_bounds = array<i64: 1, 1>, scalar_prefetch = 0 : i64, scratch_operands = 2 : i64, tpu.core_type = #tpu.core_type<tc>, window_params = [{transform_indices = @transform_0, window_bounds = array<i64: 8, 16, 32>}, {transform_indices = @transform_1, window_bounds = array<i64: 8, 16, 32>}, {transform_indices = @transform_2, window_bounds = array<i64: 16, 16>}, {transform_indices = @transform_3, window_bounds = array<i64: 8, 16, 1>}]} {
    %c0_i32 = arith.constant 0 : i32
    %0 = arith.cmpi eq, %arg1, %c0_i32 : i32
    %1 = arith.extui %0 : i1 to i32
    %c0_i32_0 = arith.constant 0 : i32
    %2 = arith.cmpi ne, %1, %c0_i32_0 : i32
    scf.if %2 {
      %cst_167 = arith.constant 0xFF800000 : f32
      %198 = vector.broadcast %cst_167 : f32 to vector<8x16x1xf32>
      %c0_168 = arith.constant 0 : index
      %c0_169 = arith.constant 0 : index
      %c0_170 = arith.constant 0 : index
      %199 = vector.load %arg6[%c0_168, %c0_169, %c0_170] : memref<8x16x1xf32, #tpu.memory_space<vmem>>, vector<8x16x1xf32>
      tpu.vector_store %arg6[%c0_168, %c0_169, %c0_170], %198 {strides = array<i32>} : memref<8x16x1xf32, #tpu.memory_space<vmem>>, vector<8x16x1xf32>,
      %cst_171 = arith.constant 0.000000e+00 : f32
      %200 = vector.broadcast %cst_171 : f32 to vector<8x16x1xf32>
      %c0_172 = arith.constant 0 : index
      %c0_173 = arith.constant 0 : index
      %c0_174 = arith.constant 0 : index
      %201 = vector.load %arg7[%c0_172, %c0_173, %c0_174] : memref<8x16x1xf32, #tpu.memory_space<vmem>>, vector<8x16x1xf32>
      tpu.vector_store %arg7[%c0_172, %c0_173, %c0_174], %200 {strides = array<i32>} : memref<8x16x1xf32, #tpu.memory_space<vmem>>, vector<8x16x1xf32>,
    } else {
    }
    %c0 = arith.constant 0 : index
    %c0_1 = arith.constant 0 : index
    %3 = vector.load %arg4[%c0, %c0_1] : memref<16x16xi8, #tpu.memory_space<vmem>>, vector<16x16xi8>
    %4 = arith.extsi %3 : vector<16x16xi8> to vector<16x16xi32>
    %5 = arith.sitofp %4 : vector<16x16xi32> to vector<16x16xf32>
    %cst = arith.constant 5.000000e-01 : f32
    %6 = vector.broadcast %cst : f32 to vector<16x16xf32>
    %7 = arith.cmpf ogt, %5, %6 : vector<16x16xf32>
    %cst_2 = arith.constant 0.000000e+00 : f32
    %cst_3 = arith.constant -1.000000e+30 : f32
    %8 = vector.broadcast %cst_2 : f32 to vector<16x16xf32>
    %9 = vector.broadcast %cst_3 : f32 to vector<16x16xf32>
    %10 = arith.select %7, %8, %9 : vector<16x16xi1>, vector<16x16xf32>
    %c0_4 = arith.constant 0 : index
    %c0_5 = arith.constant 0 : index
    %c0_6 = arith.constant 0 : index
    %11 = vector.load %arg2[%c0_4, %c0_5, %c0_6] : memref<8x16x32xf32, #tpu.memory_space<vmem>>, vector<1x16x32xf32>
    %12 = vector.shape_cast %11 : vector<1x16x32xf32> to vector<16x32xf32>
    %c0_7 = arith.constant 0 : index
    %c0_8 = arith.constant 0 : index
    %c0_9 = arith.constant 0 : index
    %13 = vector.load %arg3[%c0_7, %c0_8, %c0_9] : memref<8x16x32xf32, #tpu.memory_space<vmem>>, vector<1x16x32xf32>
    %14 = vector.shape_cast %13 : vector<1x16x32xf32> to vector<16x32xf32>
    %cst_10 = arith.constant dense<0.000000e+00> : vector<16x16xf32>
    %15 = tpu.matmul %12, %14, %cst_10 {dimension_numbers = #tpu.dot_dimension_numbers<[1], [1], [0], [0], [0, 0, 1, 0], [], []>} : vector<16x32xf32>, vector<16x32xf32>, vector<16x16xf32> -> vector<16x16xf32>
    %c0_11 = arith.constant 0 : index
    %c0_12 = arith.constant 0 : index
    %c0_13 = arith.constant 0 : index
    %16 = vector.load %arg6[%c0_11, %c0_12, %c0_13] : memref<8x16x1xf32, #tpu.memory_space<vmem>>, vector<1x16x1xf32>
    %17 = vector.shape_cast %16 : vector<1x16x1xf32> to vector<16x1xf32>
    %18 = arith.addf %15, %10 : vector<16x16xf32>
    %cst_14 = arith.constant dense<0xFF800000> : vector<16xf32>
    %19 = vector.multi_reduction <maximumf>, %18, %cst_14 [1] : vector<16x16xf32> to vector<16xf32>
    %20 = vector.shape_cast %19 : vector<16xf32> to vector<16x1xf32>
    %21 = arith.maximumf %17, %20 : vector<16x1xf32>
    %c0_15 = arith.constant 0 : index
    %c0_16 = arith.constant 0 : index
    %c0_17 = arith.constant 0 : index
    %22 = vector.load %arg6[%c0_15, %c0_16, %c0_17] : memref<8x16x1xf32, #tpu.memory_space<vmem>>, vector<1x16x1xf32>
    %23 = vector.shape_cast %22 : vector<1x16x1xf32> to vector<16x1xf32>
    %24 = vector.shape_cast %21 : vector<16x1xf32> to vector<1x16x1xf32>
    tpu.vector_store %arg6[%c0_15, %c0_16, %c0_17], %24 {strides = array<i32>} : memref<8x16x1xf32, #tpu.memory_space<vmem>>, vector<1x16x1xf32>,
    %c0_18 = arith.constant 0 : index
    %c0_19 = arith.constant 0 : index
    %c0_20 = arith.constant 0 : index
    %25 = vector.load %arg7[%c0_18, %c0_19, %c0_20] : memref<8x16x1xf32, #tpu.memory_space<vmem>>, vector<1x16x1xf32>
    %26 = vector.shape_cast %25 : vector<1x16x1xf32> to vector<16x1xf32>
    %27 = arith.mulf %15, %5 : vector<16x16xf32>
    %cst_21 = arith.constant dense<0.000000e+00> : vector<16xf32>
    %28 = vector.multi_reduction <add>, %27, %cst_21 [1] : vector<16x16xf32> to vector<16xf32>
    %29 = vector.shape_cast %28 : vector<16xf32> to vector<16x1xf32>
    %30 = arith.addf %26, %29 : vector<16x1xf32>
    %c0_22 = arith.constant 0 : index
    %c0_23 = arith.constant 0 : index
    %c0_24 = arith.constant 0 : index
    %31 = vector.load %arg7[%c0_22, %c0_23, %c0_24] : memref<8x16x1xf32, #tpu.memory_space<vmem>>, vector<1x16x1xf32>
    %32 = vector.shape_cast %31 : vector<1x16x1xf32> to vector<16x1xf32>
    %33 = vector.shape_cast %30 : vector<16x1xf32> to vector<1x16x1xf32>
    tpu.vector_store %arg7[%c0_22, %c0_23, %c0_24], %33 {strides = array<i32>} : memref<8x16x1xf32, #tpu.memory_space<vmem>>, vector<1x16x1xf32>,
    %c1 = arith.constant 1 : index
    %c0_25 = arith.constant 0 : index
    %c0_26 = arith.constant 0 : index
    %34 = vector.load %arg2[%c1, %c0_25, %c0_26] : memref<8x16x32xf32, #tpu.memory_space<vmem>>, vector<1x16x32xf32>
    %35 = vector.shape_cast %34 : vector<1x16x32xf32> to vector<16x32xf32>
    %c1_27 = arith.constant 1 : index
    %c0_28 = arith.constant 0 : index
    %c0_29 = arith.constant 0 : index
    %36 = vector.load %arg3[%c1_27, %c0_28, %c0_29] : memref<8x16x32xf32, #tpu.memory_space<vmem>>, vector<1x16x32xf32>
    %37 = vector.shape_cast %36 : vector<1x16x32xf32> to vector<16x32xf32>
    %cst_30 = arith.constant dense<0.000000e+00> : vector<16x16xf32>
    %38 = tpu.matmul %35, %37, %cst_30 {dimension_numbers = #tpu.dot_dimension_numbers<[1], [1], [0], [0], [0, 0, 1, 0], [], []>} : vector<16x32xf32>, vector<16x32xf32>, vector<16x16xf32> -> vector<16x16xf32>
    %c1_31 = arith.constant 1 : index
    %c0_32 = arith.constant 0 : index
    %c0_33 = arith.constant 0 : index
    %39 = vector.load %arg6[%c1_31, %c0_32, %c0_33] : memref<8x16x1xf32, #tpu.memory_space<vmem>>, vector<1x16x1xf32>
    %40 = vector.shape_cast %39 : vector<1x16x1xf32> to vector<16x1xf32>
    %41 = arith.addf %38, %10 : vector<16x16xf32>
    %cst_34 = arith.constant dense<0xFF800000> : vector<16xf32>
    %42 = vector.multi_reduction <maximumf>, %41, %cst_34 [1] : vector<16x16xf32> to vector<16xf32>
    %43 = vector.shape_cast %42 : vector<16xf32> to vector<16x1xf32>
    %44 = arith.maximumf %40, %43 : vector<16x1xf32>
    %c1_35 = arith.constant 1 : index
    %c0_36 = arith.constant 0 : index
    %c0_37 = arith.constant 0 : index
    %45 = vector.load %arg6[%c1_35, %c0_36, %c0_37] : memref<8x16x1xf32, #tpu.memory_space<vmem>>, vector<1x16x1xf32>
    %46 = vector.shape_cast %45 : vector<1x16x1xf32> to vector<16x1xf32>
    %47 = vector.shape_cast %44 : vector<16x1xf32> to vector<1x16x1xf32>
    tpu.vector_store %arg6[%c1_35, %c0_36, %c0_37], %47 {strides = array<i32>} : memref<8x16x1xf32, #tpu.memory_space<vmem>>, vector<1x16x1xf32>,
    %c1_38 = arith.constant 1 : index
    %c0_39 = arith.constant 0 : index
    %c0_40 = arith.constant 0 : index
    %48 = vector.load %arg7[%c1_38, %c0_39, %c0_40] : memref<8x16x1xf32, #tpu.memory_space<vmem>>, vector<1x16x1xf32>
    %49 = vector.shape_cast %48 : vector<1x16x1xf32> to vector<16x1xf32>
    %50 = arith.mulf %38, %5 : vector<16x16xf32>
    %cst_41 = arith.constant dense<0.000000e+00> : vector<16xf32>
    %51 = vector.multi_reduction <add>, %50, %cst_41 [1] : vector<16x16xf32> to vector<16xf32>
    %52 = vector.shape_cast %51 : vector<16xf32> to vector<16x1xf32>
    %53 = arith.addf %49, %52 : vector<16x1xf32>
    %c1_42 = arith.constant 1 : index
    %c0_43 = arith.constant 0 : index
    %c0_44 = arith.constant 0 : index
    %54 = vector.load %arg7[%c1_42, %c0_43, %c0_44] : memref<8x16x1xf32, #tpu.memory_space<vmem>>, vector<1x16x1xf32>
    %55 = vector.shape_cast %54 : vector<1x16x1xf32> to vector<16x1xf32>
    %56 = vector.shape_cast %53 : vector<16x1xf32> to vector<1x16x1xf32>
    tpu.vector_store %arg7[%c1_42, %c0_43, %c0_44], %56 {strides = array<i32>} : memref<8x16x1xf32, #tpu.memory_space<vmem>>, vector<1x16x1xf32>,
    %c2 = arith.constant 2 : index
    %c0_45 = arith.constant 0 : index
    %c0_46 = arith.constant 0 : index
    %57 = vector.load %arg2[%c2, %c0_45, %c0_46] : memref<8x16x32xf32, #tpu.memory_space<vmem>>, vector<1x16x32xf32>
    %58 = vector.shape_cast %57 : vector<1x16x32xf32> to vector<16x32xf32>
    %c2_47 = arith.constant 2 : index
    %c0_48 = arith.constant 0 : index
    %c0_49 = arith.constant 0 : index
    %59 = vector.load %arg3[%c2_47, %c0_48, %c0_49] : memref<8x16x32xf32, #tpu.memory_space<vmem>>, vector<1x16x32xf32>
    %60 = vector.shape_cast %59 : vector<1x16x32xf32> to vector<16x32xf32>
    %cst_50 = arith.constant dense<0.000000e+00> : vector<16x16xf32>
    %61 = tpu.matmul %58, %60, %cst_50 {dimension_numbers = #tpu.dot_dimension_numbers<[1], [1], [0], [0], [0, 0, 1, 0], [], []>} : vector<16x32xf32>, vector<16x32xf32>, vector<16x16xf32> -> vector<16x16xf32>
    %c2_51 = arith.constant 2 : index
    %c0_52 = arith.constant 0 : index
    %c0_53 = arith.constant 0 : index
    %62 = vector.load %arg6[%c2_51, %c0_52, %c0_53] : memref<8x16x1xf32, #tpu.memory_space<vmem>>, vector<1x16x1xf32>
    %63 = vector.shape_cast %62 : vector<1x16x1xf32> to vector<16x1xf32>
    %64 = arith.addf %61, %10 : vector<16x16xf32>
    %cst_54 = arith.constant dense<0xFF800000> : vector<16xf32>
    %65 = vector.multi_reduction <maximumf>, %64, %cst_54 [1] : vector<16x16xf32> to vector<16xf32>
    %66 = vector.shape_cast %65 : vector<16xf32> to vector<16x1xf32>
    %67 = arith.maximumf %63, %66 : vector<16x1xf32>
    %c2_55 = arith.constant 2 : index
    %c0_56 = arith.constant 0 : index
    %c0_57 = arith.constant 0 : index
    %68 = vector.load %arg6[%c2_55, %c0_56, %c0_57] : memref<8x16x1xf32, #tpu.memory_space<vmem>>, vector<1x16x1xf32>
    %69 = vector.shape_cast %68 : vector<1x16x1xf32> to vector<16x1xf32>
    %70 = vector.shape_cast %67 : vector<16x1xf32> to vector<1x16x1xf32>
    tpu.vector_store %arg6[%c2_55, %c0_56, %c0_57], %70 {strides = array<i32>} : memref<8x16x1xf32, #tpu.memory_space<vmem>>, vector<1x16x1xf32>,
    %c2_58 = arith.constant 2 : index
    %c0_59 = arith.constant 0 : index
    %c0_60 = arith.constant 0 : index
    %71 = vector.load %arg7[%c2_58, %c0_59, %c0_60] : memref<8x16x1xf32, #tpu.memory_space<vmem>>, vector<1x16x1xf32>
    %72 = vector.shape_cast %71 : vector<1x16x1xf32> to vector<16x1xf32>
    %73 = arith.mulf %61, %5 : vector<16x16xf32>
    %cst_61 = arith.constant dense<0.000000e+00> : vector<16xf32>
    %74 = vector.multi_reduction <add>, %73, %cst_61 [1] : vector<16x16xf32> to vector<16xf32>
    %75 = vector.shape_cast %74 : vector<16xf32> to vector<16x1xf32>
    %76 = arith.addf %72, %75 : vector<16x1xf32>
    %c2_62 = arith.constant 2 : index
    %c0_63 = arith.constant 0 : index
    %c0_64 = arith.constant 0 : index
    %77 = vector.load %arg7[%c2_62, %c0_63, %c0_64] : memref<8x16x1xf32, #tpu.memory_space<vmem>>, vector<1x16x1xf32>
    %78 = vector.shape_cast %77 : vector<1x16x1xf32> to vector<16x1xf32>
    %79 = vector.shape_cast %76 : vector<16x1xf32> to vector<1x16x1xf32>
    tpu.vector_store %arg7[%c2_62, %c0_63, %c0_64], %79 {strides = array<i32>} : memref<8x16x1xf32, #tpu.memory_space<vmem>>, vector<1x16x1xf32>,
    %c3 = arith.constant 3 : index
    %c0_65 = arith.constant 0 : index
    %c0_66 = arith.constant 0 : index
    %80 = vector.load %arg2[%c3, %c0_65, %c0_66] : memref<8x16x32xf32, #tpu.memory_space<vmem>>, vector<1x16x32xf32>
    %81 = vector.shape_cast %80 : vector<1x16x32xf32> to vector<16x32xf32>
    %c3_67 = arith.constant 3 : index
    %c0_68 = arith.constant 0 : index
    %c0_69 = arith.constant 0 : index
    %82 = vector.load %arg3[%c3_67, %c0_68, %c0_69] : memref<8x16x32xf32, #tpu.memory_space<vmem>>, vector<1x16x32xf32>
    %83 = vector.shape_cast %82 : vector<1x16x32xf32> to vector<16x32xf32>
    %cst_70 = arith.constant dense<0.000000e+00> : vector<16x16xf32>
    %84 = tpu.matmul %81, %83, %cst_70 {dimension_numbers = #tpu.dot_dimension_numbers<[1], [1], [0], [0], [0, 0, 1, 0], [], []>} : vector<16x32xf32>, vector<16x32xf32>, vector<16x16xf32> -> vector<16x16xf32>
    %c3_71 = arith.constant 3 : index
    %c0_72 = arith.constant 0 : index
    %c0_73 = arith.constant 0 : index
    %85 = vector.load %arg6[%c3_71, %c0_72, %c0_73] : memref<8x16x1xf32, #tpu.memory_space<vmem>>, vector<1x16x1xf32>
    %86 = vector.shape_cast %85 : vector<1x16x1xf32> to vector<16x1xf32>
    %87 = arith.addf %84, %10 : vector<16x16xf32>
    %cst_74 = arith.constant dense<0xFF800000> : vector<16xf32>
    %88 = vector.multi_reduction <maximumf>, %87, %cst_74 [1] : vector<16x16xf32> to vector<16xf32>
    %89 = vector.shape_cast %88 : vector<16xf32> to vector<16x1xf32>
    %90 = arith.maximumf %86, %89 : vector<16x1xf32>
    %c3_75 = arith.constant 3 : index
    %c0_76 = arith.constant 0 : index
    %c0_77 = arith.constant 0 : index
    %91 = vector.load %arg6[%c3_75, %c0_76, %c0_77] : memref<8x16x1xf32, #tpu.memory_space<vmem>>, vector<1x16x1xf32>
    %92 = vector.shape_cast %91 : vector<1x16x1xf32> to vector<16x1xf32>
    %93 = vector.shape_cast %90 : vector<16x1xf32> to vector<1x16x1xf32>
    tpu.vector_store %arg6[%c3_75, %c0_76, %c0_77], %93 {strides = array<i32>} : memref<8x16x1xf32, #tpu.memory_space<vmem>>, vector<1x16x1xf32>,
    %c3_78 = arith.constant 3 : index
    %c0_79 = arith.constant 0 : index
    %c0_80 = arith.constant 0 : index
    %94 = vector.load %arg7[%c3_78, %c0_79, %c0_80] : memref<8x16x1xf32, #tpu.memory_space<vmem>>, vector<1x16x1xf32>
    %95 = vector.shape_cast %94 : vector<1x16x1xf32> to vector<16x1xf32>
    %96 = arith.mulf %84, %5 : vector<16x16xf32>
    %cst_81 = arith.constant dense<0.000000e+00> : vector<16xf32>
    %97 = vector.multi_reduction <add>, %96, %cst_81 [1] : vector<16x16xf32> to vector<16xf32>
    %98 = vector.shape_cast %97 : vector<16xf32> to vector<16x1xf32>
    %99 = arith.addf %95, %98 : vector<16x1xf32>
    %c3_82 = arith.constant 3 : index
    %c0_83 = arith.constant 0 : index
    %c0_84 = arith.constant 0 : index
    %100 = vector.load %arg7[%c3_82, %c0_83, %c0_84] : memref<8x16x1xf32, #tpu.memory_space<vmem>>, vector<1x16x1xf32>
    %101 = vector.shape_cast %100 : vector<1x16x1xf32> to vector<16x1xf32>
    %102 = vector.shape_cast %99 : vector<16x1xf32> to vector<1x16x1xf32>
    tpu.vector_store %arg7[%c3_82, %c0_83, %c0_84], %102 {strides = array<i32>} : memref<8x16x1xf32, #tpu.memory_space<vmem>>, vector<1x16x1xf32>,
    %c4 = arith.constant 4 : index
    %c0_85 = arith.constant 0 : index
    %c0_86 = arith.constant 0 : index
    %103 = vector.load %arg2[%c4, %c0_85, %c0_86] : memref<8x16x32xf32, #tpu.memory_space<vmem>>, vector<1x16x32xf32>
    %104 = vector.shape_cast %103 : vector<1x16x32xf32> to vector<16x32xf32>
    %c4_87 = arith.constant 4 : index
    %c0_88 = arith.constant 0 : index
    %c0_89 = arith.constant 0 : index
    %105 = vector.load %arg3[%c4_87, %c0_88, %c0_89] : memref<8x16x32xf32, #tpu.memory_space<vmem>>, vector<1x16x32xf32>
    %106 = vector.shape_cast %105 : vector<1x16x32xf32> to vector<16x32xf32>
    %cst_90 = arith.constant dense<0.000000e+00> : vector<16x16xf32>
    %107 = tpu.matmul %104, %106, %cst_90 {dimension_numbers = #tpu.dot_dimension_numbers<[1], [1], [0], [0], [0, 0, 1, 0], [], []>} : vector<16x32xf32>, vector<16x32xf32>, vector<16x16xf32> -> vector<16x16xf32>
    %c4_91 = arith.constant 4 : index
    %c0_92 = arith.constant 0 : index
    %c0_93 = arith.constant 0 : index
    %108 = vector.load %arg6[%c4_91, %c0_92, %c0_93] : memref<8x16x1xf32, #tpu.memory_space<vmem>>, vector<1x16x1xf32>
    %109 = vector.shape_cast %108 : vector<1x16x1xf32> to vector<16x1xf32>
    %110 = arith.addf %107, %10 : vector<16x16xf32>
    %cst_94 = arith.constant dense<0xFF800000> : vector<16xf32>
    %111 = vector.multi_reduction <maximumf>, %110, %cst_94 [1] : vector<16x16xf32> to vector<16xf32>
    %112 = vector.shape_cast %111 : vector<16xf32> to vector<16x1xf32>
    %113 = arith.maximumf %109, %112 : vector<16x1xf32>
    %c4_95 = arith.constant 4 : index
    %c0_96 = arith.constant 0 : index
    %c0_97 = arith.constant 0 : index
    %114 = vector.load %arg6[%c4_95, %c0_96, %c0_97] : memref<8x16x1xf32, #tpu.memory_space<vmem>>, vector<1x16x1xf32>
    %115 = vector.shape_cast %114 : vector<1x16x1xf32> to vector<16x1xf32>
    %116 = vector.shape_cast %113 : vector<16x1xf32> to vector<1x16x1xf32>
    tpu.vector_store %arg6[%c4_95, %c0_96, %c0_97], %116 {strides = array<i32>} : memref<8x16x1xf32, #tpu.memory_space<vmem>>, vector<1x16x1xf32>,
    %c4_98 = arith.constant 4 : index
    %c0_99 = arith.constant 0 : index
    %c0_100 = arith.constant 0 : index
    %117 = vector.load %arg7[%c4_98, %c0_99, %c0_100] : memref<8x16x1xf32, #tpu.memory_space<vmem>>, vector<1x16x1xf32>
    %118 = vector.shape_cast %117 : vector<1x16x1xf32> to vector<16x1xf32>
    %119 = arith.mulf %107, %5 : vector<16x16xf32>
    %cst_101 = arith.constant dense<0.000000e+00> : vector<16xf32>
    %120 = vector.multi_reduction <add>, %119, %cst_101 [1] : vector<16x16xf32> to vector<16xf32>
    %121 = vector.shape_cast %120 : vector<16xf32> to vector<16x1xf32>
    %122 = arith.addf %118, %121 : vector<16x1xf32>
    %c4_102 = arith.constant 4 : index
    %c0_103 = arith.constant 0 : index
    %c0_104 = arith.constant 0 : index
    %123 = vector.load %arg7[%c4_102, %c0_103, %c0_104] : memref<8x16x1xf32, #tpu.memory_space<vmem>>, vector<1x16x1xf32>
    %124 = vector.shape_cast %123 : vector<1x16x1xf32> to vector<16x1xf32>
    %125 = vector.shape_cast %122 : vector<16x1xf32> to vector<1x16x1xf32>
    tpu.vector_store %arg7[%c4_102, %c0_103, %c0_104], %125 {strides = array<i32>} : memref<8x16x1xf32, #tpu.memory_space<vmem>>, vector<1x16x1xf32>,
    %c5 = arith.constant 5 : index
    %c0_105 = arith.constant 0 : index
    %c0_106 = arith.constant 0 : index
    %126 = vector.load %arg2[%c5, %c0_105, %c0_106] : memref<8x16x32xf32, #tpu.memory_space<vmem>>, vector<1x16x32xf32>
    %127 = vector.shape_cast %126 : vector<1x16x32xf32> to vector<16x32xf32>
    %c5_107 = arith.constant 5 : index
    %c0_108 = arith.constant 0 : index
    %c0_109 = arith.constant 0 : index
    %128 = vector.load %arg3[%c5_107, %c0_108, %c0_109] : memref<8x16x32xf32, #tpu.memory_space<vmem>>, vector<1x16x32xf32>
    %129 = vector.shape_cast %128 : vector<1x16x32xf32> to vector<16x32xf32>
    %cst_110 = arith.constant dense<0.000000e+00> : vector<16x16xf32>
    %130 = tpu.matmul %127, %129, %cst_110 {dimension_numbers = #tpu.dot_dimension_numbers<[1], [1], [0], [0], [0, 0, 1, 0], [], []>} : vector<16x32xf32>, vector<16x32xf32>, vector<16x16xf32> -> vector<16x16xf32>
    %c5_111 = arith.constant 5 : index
    %c0_112 = arith.constant 0 : index
    %c0_113 = arith.constant 0 : index
    %131 = vector.load %arg6[%c5_111, %c0_112, %c0_113] : memref<8x16x1xf32, #tpu.memory_space<vmem>>, vector<1x16x1xf32>
    %132 = vector.shape_cast %131 : vector<1x16x1xf32> to vector<16x1xf32>
    %133 = arith.addf %130, %10 : vector<16x16xf32>
    %cst_114 = arith.constant dense<0xFF800000> : vector<16xf32>
    %134 = vector.multi_reduction <maximumf>, %133, %cst_114 [1] : vector<16x16xf32> to vector<16xf32>
    %135 = vector.shape_cast %134 : vector<16xf32> to vector<16x1xf32>
    %136 = arith.maximumf %132, %135 : vector<16x1xf32>
    %c5_115 = arith.constant 5 : index
    %c0_116 = arith.constant 0 : index
    %c0_117 = arith.constant 0 : index
    %137 = vector.load %arg6[%c5_115, %c0_116, %c0_117] : memref<8x16x1xf32, #tpu.memory_space<vmem>>, vector<1x16x1xf32>
    %138 = vector.shape_cast %137 : vector<1x16x1xf32> to vector<16x1xf32>
    %139 = vector.shape_cast %136 : vector<16x1xf32> to vector<1x16x1xf32>
    tpu.vector_store %arg6[%c5_115, %c0_116, %c0_117], %139 {strides = array<i32>} : memref<8x16x1xf32, #tpu.memory_space<vmem>>, vector<1x16x1xf32>,
    %c5_118 = arith.constant 5 : index
    %c0_119 = arith.constant 0 : index
    %c0_120 = arith.constant 0 : index
    %140 = vector.load %arg7[%c5_118, %c0_119, %c0_120] : memref<8x16x1xf32, #tpu.memory_space<vmem>>, vector<1x16x1xf32>
    %141 = vector.shape_cast %140 : vector<1x16x1xf32> to vector<16x1xf32>
    %142 = arith.mulf %130, %5 : vector<16x16xf32>
    %cst_121 = arith.constant dense<0.000000e+00> : vector<16xf32>
    %143 = vector.multi_reduction <add>, %142, %cst_121 [1] : vector<16x16xf32> to vector<16xf32>
    %144 = vector.shape_cast %143 : vector<16xf32> to vector<16x1xf32>
    %145 = arith.addf %141, %144 : vector<16x1xf32>
    %c5_122 = arith.constant 5 : index
    %c0_123 = arith.constant 0 : index
    %c0_124 = arith.constant 0 : index
    %146 = vector.load %arg7[%c5_122, %c0_123, %c0_124] : memref<8x16x1xf32, #tpu.memory_space<vmem>>, vector<1x16x1xf32>
    %147 = vector.shape_cast %146 : vector<1x16x1xf32> to vector<16x1xf32>
    %148 = vector.shape_cast %145 : vector<16x1xf32> to vector<1x16x1xf32>
    tpu.vector_store %arg7[%c5_122, %c0_123, %c0_124], %148 {strides = array<i32>} : memref<8x16x1xf32, #tpu.memory_space<vmem>>, vector<1x16x1xf32>,
    %c6 = arith.constant 6 : index
    %c0_125 = arith.constant 0 : index
    %c0_126 = arith.constant 0 : index
    %149 = vector.load %arg2[%c6, %c0_125, %c0_126] : memref<8x16x32xf32, #tpu.memory_space<vmem>>, vector<1x16x32xf32>
    %150 = vector.shape_cast %149 : vector<1x16x32xf32> to vector<16x32xf32>
    %c6_127 = arith.constant 6 : index
    %c0_128 = arith.constant 0 : index
    %c0_129 = arith.constant 0 : index
    %151 = vector.load %arg3[%c6_127, %c0_128, %c0_129] : memref<8x16x32xf32, #tpu.memory_space<vmem>>, vector<1x16x32xf32>
    %152 = vector.shape_cast %151 : vector<1x16x32xf32> to vector<16x32xf32>
    %cst_130 = arith.constant dense<0.000000e+00> : vector<16x16xf32>
    %153 = tpu.matmul %150, %152, %cst_130 {dimension_numbers = #tpu.dot_dimension_numbers<[1], [1], [0], [0], [0, 0, 1, 0], [], []>} : vector<16x32xf32>, vector<16x32xf32>, vector<16x16xf32> -> vector<16x16xf32>
    %c6_131 = arith.constant 6 : index
    %c0_132 = arith.constant 0 : index
    %c0_133 = arith.constant 0 : index
    %154 = vector.load %arg6[%c6_131, %c0_132, %c0_133] : memref<8x16x1xf32, #tpu.memory_space<vmem>>, vector<1x16x1xf32>
    %155 = vector.shape_cast %154 : vector<1x16x1xf32> to vector<16x1xf32>
    %156 = arith.addf %153, %10 : vector<16x16xf32>
    %cst_134 = arith.constant dense<0xFF800000> : vector<16xf32>
    %157 = vector.multi_reduction <maximumf>, %156, %cst_134 [1] : vector<16x16xf32> to vector<16xf32>
    %158 = vector.shape_cast %157 : vector<16xf32> to vector<16x1xf32>
    %159 = arith.maximumf %155, %158 : vector<16x1xf32>
    %c6_135 = arith.constant 6 : index
    %c0_136 = arith.constant 0 : index
    %c0_137 = arith.constant 0 : index
    %160 = vector.load %arg6[%c6_135, %c0_136, %c0_137] : memref<8x16x1xf32, #tpu.memory_space<vmem>>, vector<1x16x1xf32>
    %161 = vector.shape_cast %160 : vector<1x16x1xf32> to vector<16x1xf32>
    %162 = vector.shape_cast %159 : vector<16x1xf32> to vector<1x16x1xf32>
    tpu.vector_store %arg6[%c6_135, %c0_136, %c0_137], %162 {strides = array<i32>} : memref<8x16x1xf32, #tpu.memory_space<vmem>>, vector<1x16x1xf32>,
    %c6_138 = arith.constant 6 : index
    %c0_139 = arith.constant 0 : index
    %c0_140 = arith.constant 0 : index
    %163 = vector.load %arg7[%c6_138, %c0_139, %c0_140] : memref<8x16x1xf32, #tpu.memory_space<vmem>>, vector<1x16x1xf32>
    %164 = vector.shape_cast %163 : vector<1x16x1xf32> to vector<16x1xf32>
    %165 = arith.mulf %153, %5 : vector<16x16xf32>
    %cst_141 = arith.constant dense<0.000000e+00> : vector<16xf32>
    %166 = vector.multi_reduction <add>, %165, %cst_141 [1] : vector<16x16xf32> to vector<16xf32>
    %167 = vector.shape_cast %166 : vector<16xf32> to vector<16x1xf32>
    %168 = arith.addf %164, %167 : vector<16x1xf32>
    %c6_142 = arith.constant 6 : index
    %c0_143 = arith.constant 0 : index
    %c0_144 = arith.constant 0 : index
    %169 = vector.load %arg7[%c6_142, %c0_143, %c0_144] : memref<8x16x1xf32, #tpu.memory_space<vmem>>, vector<1x16x1xf32>
    %170 = vector.shape_cast %169 : vector<1x16x1xf32> to vector<16x1xf32>
    %171 = vector.shape_cast %168 : vector<16x1xf32> to vector<1x16x1xf32>
    tpu.vector_store %arg7[%c6_142, %c0_143, %c0_144], %171 {strides = array<i32>} : memref<8x16x1xf32, #tpu.memory_space<vmem>>, vector<1x16x1xf32>,
    %c7 = arith.constant 7 : index
    %c0_145 = arith.constant 0 : index
    %c0_146 = arith.constant 0 : index
    %172 = vector.load %arg2[%c7, %c0_145, %c0_146] : memref<8x16x32xf32, #tpu.memory_space<vmem>>, vector<1x16x32xf32>
    %173 = vector.shape_cast %172 : vector<1x16x32xf32> to vector<16x32xf32>
    %c7_147 = arith.constant 7 : index
    %c0_148 = arith.constant 0 : index
    %c0_149 = arith.constant 0 : index
    %174 = vector.load %arg3[%c7_147, %c0_148, %c0_149] : memref<8x16x32xf32, #tpu.memory_space<vmem>>, vector<1x16x32xf32>
    %175 = vector.shape_cast %174 : vector<1x16x32xf32> to vector<16x32xf32>
    %cst_150 = arith.constant dense<0.000000e+00> : vector<16x16xf32>
    %176 = tpu.matmul %173, %175, %cst_150 {dimension_numbers = #tpu.dot_dimension_numbers<[1], [1], [0], [0], [0, 0, 1, 0], [], []>} : vector<16x32xf32>, vector<16x32xf32>, vector<16x16xf32> -> vector<16x16xf32>
    %c7_151 = arith.constant 7 : index
    %c0_152 = arith.constant 0 : index
    %c0_153 = arith.constant 0 : index
    %177 = vector.load %arg6[%c7_151, %c0_152, %c0_153] : memref<8x16x1xf32, #tpu.memory_space<vmem>>, vector<1x16x1xf32>
    %178 = vector.shape_cast %177 : vector<1x16x1xf32> to vector<16x1xf32>
    %179 = arith.addf %176, %10 : vector<16x16xf32>
    %cst_154 = arith.constant dense<0xFF800000> : vector<16xf32>
    %180 = vector.multi_reduction <maximumf>, %179, %cst_154 [1] : vector<16x16xf32> to vector<16xf32>
    %181 = vector.shape_cast %180 : vector<16xf32> to vector<16x1xf32>
    %182 = arith.maximumf %178, %181 : vector<16x1xf32>
    %c7_155 = arith.constant 7 : index
    %c0_156 = arith.constant 0 : index
    %c0_157 = arith.constant 0 : index
    %183 = vector.load %arg6[%c7_155, %c0_156, %c0_157] : memref<8x16x1xf32, #tpu.memory_space<vmem>>, vector<1x16x1xf32>
    %184 = vector.shape_cast %183 : vector<1x16x1xf32> to vector<16x1xf32>
    %185 = vector.shape_cast %182 : vector<16x1xf32> to vector<1x16x1xf32>
    tpu.vector_store %arg6[%c7_155, %c0_156, %c0_157], %185 {strides = array<i32>} : memref<8x16x1xf32, #tpu.memory_space<vmem>>, vector<1x16x1xf32>,
    %c7_158 = arith.constant 7 : index
    %c0_159 = arith.constant 0 : index
    %c0_160 = arith.constant 0 : index
    %186 = vector.load %arg7[%c7_158, %c0_159, %c0_160] : memref<8x16x1xf32, #tpu.memory_space<vmem>>, vector<1x16x1xf32>
    %187 = vector.shape_cast %186 : vector<1x16x1xf32> to vector<16x1xf32>
    %188 = arith.mulf %176, %5 : vector<16x16xf32>
    %cst_161 = arith.constant dense<0.000000e+00> : vector<16xf32>
    %189 = vector.multi_reduction <add>, %188, %cst_161 [1] : vector<16x16xf32> to vector<16xf32>
    %190 = vector.shape_cast %189 : vector<16xf32> to vector<16x1xf32>
    %191 = arith.addf %187, %190 : vector<16x1xf32>
    %c7_162 = arith.constant 7 : index
    %c0_163 = arith.constant 0 : index
    %c0_164 = arith.constant 0 : index
    %192 = vector.load %arg7[%c7_162, %c0_163, %c0_164] : memref<8x16x1xf32, #tpu.memory_space<vmem>>, vector<1x16x1xf32>
    %193 = vector.shape_cast %192 : vector<1x16x1xf32> to vector<16x1xf32>
    %194 = vector.shape_cast %191 : vector<16x1xf32> to vector<1x16x1xf32>
    tpu.vector_store %arg7[%c7_162, %c0_163, %c0_164], %194 {strides = array<i32>} : memref<8x16x1xf32, #tpu.memory_space<vmem>>, vector<1x16x1xf32>,
    %c0_i32_165 = arith.constant 0 : i32
    %195 = arith.cmpi eq, %arg1, %c0_i32_165 : i32
    %196 = arith.extui %195 : i1 to i32
    %c0_i32_166 = arith.constant 0 : i32
    %197 = arith.cmpi ne, %196, %c0_i32_166 : i32
    scf.if %197 {
      %c0_167 = arith.constant 0 : index
      %c0_168 = arith.constant 0 : index
      %c0_169 = arith.constant 0 : index
      %198 = vector.load %arg6[%c0_167, %c0_168, %c0_169] : memref<8x16x1xf32, #tpu.memory_space<vmem>>, vector<8x16x1xf32>
      %c0_170 = arith.constant 0 : index
      %c0_171 = arith.constant 0 : index
      %c0_172 = arith.constant 0 : index
      %199 = vector.load %arg7[%c0_170, %c0_171, %c0_172] : memref<8x16x1xf32, #tpu.memory_space<vmem>>, vector<8x16x1xf32>
      %cst_173 = arith.constant 6.250000e-02 : f32
      %200 = vector.broadcast %cst_173 : f32 to vector<8x16x1xf32>
      %201 = arith.mulf %199, %200 : vector<8x16x1xf32>
      %202 = arith.subf %198, %201 : vector<8x16x1xf32>
      %c0_174 = arith.constant 0 : index
      %c0_175 = arith.constant 0 : index
      %c0_176 = arith.constant 0 : index
      %203 = vector.load %arg5[%c0_174, %c0_175, %c0_176] : memref<8x16x1xf32, #tpu.memory_space<vmem>>, vector<8x16x1xf32>
      tpu.vector_store %arg5[%c0_174, %c0_175, %c0_176], %202 {strides = array<i32>} : memref<8x16x1xf32, #tpu.memory_space<vmem>>, vector<8x16x1xf32>,
    } else {
    }
    return
  }
  func.func @transform_0(%arg0: i32, %arg1: i32) -> (i32, i32, i32) {
    %c0_i32 = arith.constant 0 : i32
    %c0_i32_0 = arith.constant 0 : i32
    %c0_i32_1 = arith.constant 0 : i32
    return %arg0, %c0_i32, %c0_i32_0 : i32, i32, i32
  }
  func.func @transform_1(%arg0: i32, %arg1: i32) -> (i32, i32, i32) {
    %c0_i32 = arith.constant 0 : i32
    %c0_i32_0 = arith.constant 0 : i32
    return %arg0, %arg1, %c0_i32 : i32, i32, i32
  }
  func.func @transform_2(%arg0: i32, %arg1: i32) -> (i32, i32) {
    %c0_i32 = arith.constant 0 : i32
    %c0_i32_0 = arith.constant 0 : i32
    return %c0_i32, %arg1 : i32, i32
  }
  func.func @transform_3(%arg0: i32, %arg1: i32) -> (i32, i32, i32) {
    %c0_i32 = arith.constant 0 : i32
    %c0_i32_0 = arith.constant 0 : i32
    %c0_i32_1 = arith.constant 0 : i32
    return %arg0, %c0_i32, %c0_i32_0 : i32, i32, i32
  }
}

</mosaic_0001>

<llo_original>
// kernel: tpu_custom_call.1
$region0: #{tpu_custom_call.1}
  #allocation0 [shape = 'u32[]', space=smem, size = 0x4, offset = 0x4, fixed_abs, tag = 'smem constant byte address 0x4 - core index']
  #allocation1 [shape = 'u32[144,128]{1,0:T(1,128)}', space=vmem, size = 0x12000, scoped, tag = 'internal scratch']
  #allocation2 [shape = 'f32[8,16,1]{2,1,0:T(8,128)}', space=vmem, size = 0x10000, scoped, tag = 'scratch operand']
  #allocation3 [shape = 'f32[8,16,1]{2,1,0:T(8,128)}', space=vmem, size = 0x10000, scoped, tag = 'scratch operand']
  %s0 = inlined_call_operand.hbm [shape: f32[8,16,32], index: 0, kind: input, shape index: {}]
  %s1 = inlined_call_operand.hbm [shape: f32[8,16,32], index: 1, kind: input, shape index: {}]
  %s2 = inlined_call_operand.hbm [shape: s8[16,16], index: 2, kind: input, shape index: {}]
  %s3 = inlined_call_operand.vmem [shape: f32[8,16,1], index: 3, kind: output, shape index: {}]
  %s4 = sld [smem:[#allocation0]]
  $region42: #{tpu_custom_call.1} parent=0
    _
  %s6 = ssub.s32 1, %s4
  %s7 = scalar_select 0, %s6, %s4
  $region1: #{tpu_custom_call.1} parent=0
    #allocation4 [shape = 'u8[65536]{0}', space=vmem, size = 0x10000, scoped, tag = 'input window, operand 0, single buffered']
    #allocation5 [shape = 's32[1]{0}', space=sflag, size = 0x4, scoped, tag = 'scoped memory for tpu_custom_call.1']
    #allocation6 [shape = 'u8[65536]{0}', space=vmem, size = 0x10000, scoped, tag = 'input window, operand 1, single buffered']
    #allocation7 [shape = 's32[1]{0}', space=sflag, size = 0x4, scoped, tag = 'scoped memory for tpu_custom_call.1']
    #allocation8 [shape = 'u8[2048]{0}', space=vmem, size = 0x800, scoped, tag = 'input window, operand 2, single buffered']
    %8 = vsyncpa [#allocation5], 0
    %9 = vsyncpa [#allocation7], 0
    // Predicated region
    $region2: #{tpu_custom_call.1} parent=1 // pred_check
      _
    $region3: #{tpu_custom_call.1} parent=1 // pred_check_branch
      %11 = sbr.rel (0) target = $region5
    $region4: #{tpu_custom_call.1} parent=1 // pred_region
      %s13 = ssub.s32 2048, 2048
      %14 = vsyncadd [#allocation5], %s13
      %s15 = sshll.u32 [#allocation4], 4
      %s16 = int_to_ptr.vmem [resolvable:$true] %s15
      %21 = dma.hbm_to_vmem [thread:$0]  %s0, 2048, %s16, [#allocation5], 128, 128, 8
    $region5: #{tpu_custom_call.1} parent=1 // pred_fallthru
      _
    // Predicated region
    $region6: #{tpu_custom_call.1} parent=1 // pred_check
      _
    $region7: #{tpu_custom_call.1} parent=1 // pred_check_branch
      %23 = sbr.rel (0) target = $region9
    $region8: #{tpu_custom_call.1} parent=1 // pred_region
      %s25 = ssub.s32 2048, 2048
      %26 = vsyncadd [#allocation7], %s25
      %s27 = sshll.u32 [#allocation6], 4
      %s28 = int_to_ptr.vmem [resolvable:$true] %s27
      %33 = dma.hbm_to_vmem [thread:$0]  %s1, 2048, %s28, [#allocation7], 128, 128, 8
    $region9: #{tpu_custom_call.1} parent=1 // pred_fallthru
      _
    // Predicated region
    $region10: #{tpu_custom_call.1} parent=1 // pred_check
      _
    $region11: #{tpu_custom_call.1} parent=1 // pred_check_branch
      %35 = sbr.rel (0) target = $region13
    $region12: #{tpu_custom_call.1} parent=1 // pred_region
      %s37 = ssub.s32 64, 64
      %38 = vsyncadd [#allocation7], %s37
      %s39 = sshll.u32 [#allocation8], 4
      %s40 = int_to_ptr.vmem [resolvable:$true] %s39
      %45 = dma.hbm_to_vmem [thread:$0]  %s2, 64, %s40, [#allocation7], 32, 32, 2
    $region13: #{tpu_custom_call.1} parent=1 // pred_fallthru
      _
    // Predicated region
    $region14: #{tpu_custom_call.1} parent=1 // pred_check
      _
    $region15: #{tpu_custom_call.1} parent=1 // pred_check_branch
      %47 = sbr.rel (0) target = $region17
    $region16: #{tpu_custom_call.1} parent=1 // pred_region
      %48 = dma.done [#allocation5], 2048
    $region17: #{tpu_custom_call.1} parent=1 // pred_fallthru
      _
    // Predicated region
    $region18: #{tpu_custom_call.1} parent=1 // pred_check
      _
    $region19: #{tpu_custom_call.1} parent=1 // pred_check_branch
      %50 = sbr.rel (0) target = $region21
    $region20: #{tpu_custom_call.1} parent=1 // pred_region
      %51 = dma.done [#allocation7], 2048
    $region21: #{tpu_custom_call.1} parent=1 // pred_fallthru
      _
    // Predicated region
    $region22: #{tpu_custom_call.1} parent=1 // pred_check
      _
    $region23: #{tpu_custom_call.1} parent=1 // pred_check_branch
      %53 = sbr.rel (0) target = $region25
    $region24: #{tpu_custom_call.1} parent=1 // pred_region
      %54 = dma.done [#allocation7], 64
    $region25: #{tpu_custom_call.1} parent=1 // pred_fallthru
      _
    %p55 = scmp.eq.s32.totalorder 0, 0
    // Predicated region
    $region26: #{tpu_custom_call.1} parent=1 // pred_check
      %p56 = pneg %p55
    $region27: #{tpu_custom_call.1} parent=1 // pred_check_branch
      %58 = sbr.rel (%p56) target = $region29
    $region28: #{tpu_custom_call.1} parent=1 // pred_region
      %vm59 = vcmask 7168
      %60 = vst.msk [vmem:[#allocation2] sm:$0xff] %vm59, -inf
      %61 = vst.msk [vmem:[#allocation2 + $0x8] sm:$0xff] %vm59, -inf
      %62 = vst.msk [vmem:[#allocation2 + $0x10] sm:$0xff] %vm59, -inf
      %63 = vst.msk [vmem:[#allocation2 + $0x18] sm:$0xff] %vm59, -inf
      %64 = vst.msk [vmem:[#allocation2 + $0x20] sm:$0xff] %vm59, -inf
      %65 = vst.msk [vmem:[#allocation2 + $0x28] sm:$0xff] %vm59, -inf
      %66 = vst.msk [vmem:[#allocation2 + $0x30] sm:$0xff] %vm59, -inf
      %67 = vst.msk [vmem:[#allocation2 + $0x38] sm:$0xff] %vm59, -inf
      %68 = vst.msk [vmem:[#allocation2 + $0x40] sm:$0xff] %vm59, -inf
      %69 = vst.msk [vmem:[#allocation2 + $0x48] sm:$0xff] %vm59, -inf
      %70 = vst.msk [vmem:[#allocation2 + $0x50] sm:$0xff] %vm59, -inf
      %71 = vst.msk [vmem:[#allocation2 + $0x58] sm:$0xff] %vm59, -inf
      %72 = vst.msk [vmem:[#allocation2 + $0x60] sm:$0xff] %vm59, -inf
      %73 = vst.msk [vmem:[#allocation2 + $0x68] sm:$0xff] %vm59, -inf
      %74 = vst.msk [vmem:[#allocation2 + $0x70] sm:$0xff] %vm59, -inf
      %75 = vst.msk [vmem:[#allocation2 + $0x78] sm:$0xff] %vm59, -inf
      %76 = vst.msk [vmem:[#allocation3] sm:$0xff] %vm59, 0.0
      %77 = vst.msk [vmem:[#allocation3 + $0x8] sm:$0xff] %vm59, 0.0
      %78 = vst.msk [vmem:[#allocation3 + $0x10] sm:$0xff] %vm59, 0.0
      %79 = vst.msk [vmem:[#allocation3 + $0x18] sm:$0xff] %vm59, 0.0
      %80 = vst.msk [vmem:[#allocation3 + $0x20] sm:$0xff] %vm59, 0.0
      %81 = vst.msk [vmem:[#allocation3 + $0x28] sm:$0xff] %vm59, 0.0
      %82 = vst.msk [vmem:[#allocation3 + $0x30] sm:$0xff] %vm59, 0.0
      %83 = vst.msk [vmem:[#allocation3 + $0x38] sm:$0xff] %vm59, 0.0
      %84 = vst.msk [vmem:[#allocation3 + $0x40] sm:$0xff] %vm59, 0.0
      %85 = vst.msk [vmem:[#allocation3 + $0x48] sm:$0xff] %vm59, 0.0
      %86 = vst.msk [vmem:[#allocation3 + $0x50] sm:$0xff] %vm59, 0.0
      %87 = vst.msk [vmem:[#allocation3 + $0x58] sm:$0xff] %vm59, 0.0
      %88 = vst.msk [vmem:[#allocation3 + $0x60] sm:$0xff] %vm59, 0.0
      %89 = vst.msk [vmem:[#allocation3 + $0x68] sm:$0xff] %vm59, 0.0
      %90 = vst.msk [vmem:[#allocation3 + $0x70] sm:$0xff] %vm59, 0.0
      %91 = vst.msk [vmem:[#allocation3 + $0x78] sm:$0xff] %vm59, 0.0
    $region29: #{tpu_custom_call.1} parent=1 // pred_fallthru
      _
    %v92 = vld [vmem:[#allocation8] sm:$0x3]
    %v93 = vld [vmem:[#allocation8 + $0x2] sm:$0x3]
    %v94 = vunpack.c.0.s8 %v92
    %v95 = vunpack.c.0.s8 %v93
    %v96 = vcvt.s32.f32 %v94
    %v97 = vcvt.s32.f32 %v95
    %vm98 = vcmp.gt.f32.partialorder %v96, 0.5
    %vm99 = vcmp.gt.f32.partialorder %v97, 0.5
    %v100 = vsel %vm98, 0.0, -1e+30
    %v101 = vsel %vm99, 0.0, -1e+30
    %v102 = vld [vmem:[#allocation4] sm:$0xff]
    %v103 = vld [vmem:[#allocation4 + $0x8] sm:$0xff]
    %v104 = vld [vmem:[#allocation6] sm:$0xff]
    %v105 = vld [vmem:[#allocation6 + $0x8] sm:$0xff]
    %vm106 = vcmask 261120
    %v108 = vsel %vm106, %v102, 0
    %v111 = vsel %vm106, %v103, 0
    %v114 = vsel %vm106, %v104, 0
    %v117 = vsel %vm106, %v105, 0
    %119 = vmatprep.subr.mxu0 0.0
    %120 = vmatpush1.xpose.msra.mxu0 0.0
    %121 = vmatprep.subr.mxu0 0.0
    %122 = vmatpush1.xpose.msra.mxu0 0.0
    %123 = vmatprep.subr.mxu0 0.0
    %124 = vmatpush1.xpose.msra.mxu0 0.0
    %125 = vmatprep.subr.mxu0 0.0
    %126 = vmatpush1.xpose.msra.mxu0 0.0
    %127 = vmatprep.subr.mxu0 0.0
    %128 = vmatpush1.xpose.msra.mxu0 0.0
    %129 = vmatprep.subr.mxu0 0.0
    %130 = vmatpush1.xpose.msra.mxu0 0.0
    %131 = vmatprep.subr.mxu0 0.0
    %132 = vmatpush1.xpose.msra.mxu0 0.0
    %133 = vmatprep.subr.mxu0 0.0
    %134 = vmatpush1.xpose.msra.mxu0 0.0
    %135 = vmatprep.subr.mxu0 0.0
    %136 = vmatpush1.xpose.msra.mxu0 0.0
    %137 = vmatprep.subr.mxu0 0.0
    %138 = vmatpush1.xpose.msra.mxu0 0.0
    %139 = vmatprep.subr.mxu0 0.0
    %140 = vmatpush1.xpose.msra.mxu0 0.0
    %141 = vmatprep.subr.mxu0 0.0
    %142 = vmatpush1.xpose.msra.mxu0 0.0
    %143 = vmatprep.subr.mxu0 0.0
    %144 = vmatpush1.xpose.msra.mxu0 0.0
    %145 = vmatprep.subr.mxu0 0.0
    %146 = vmatpush1.xpose.msra.mxu0 0.0
    %147 = vmatprep.subr.mxu0 0.0
    %148 = vmatpush1.xpose.msra.mxu0 %v117
    %149 = vmatprep.subr.mxu0 0.0
    %150 = vmatpush1.xpose.msra.mxu0 %v114
    %151 = vmatprep.subr.mxu0 0.0
    %152 = vmatpush2.xpose.msra.mxu0 0.0
    %153 = vmatprep.subr.mxu0 0.0
    %154 = vmatpush2.xpose.msra.mxu0 0.0
    %155 = vmatprep.subr.mxu0 0.0
    %156 = vmatpush2.xpose.msra.mxu0 0.0
    %157 = vmatprep.subr.mxu0 0.0
    %158 = vmatpush2.xpose.msra.mxu0 0.0
    %159 = vmatprep.subr.mxu0 0.0
    %160 = vmatpush2.xpose.msra.mxu0 0.0
    %161 = vmatprep.subr.mxu0 0.0
    %162 = vmatpush2.xpose.msra.mxu0 0.0
    %163 = vmatprep.subr.mxu0 0.0
    %164 = vmatpush2.xpose.msra.mxu0 0.0
    %165 = vmatprep.subr.mxu0 0.0
    %166 = vmatpush2.xpose.msra.mxu0 0.0
    %167 = vmatprep.subr.mxu0 0.0
    %168 = vmatpush2.xpose.msra.mxu0 0.0
    %169 = vmatprep.subr.mxu0 0.0
    %170 = vmatpush2.xpose.msra.mxu0 0.0
    %171 = vmatprep.subr.mxu0 0.0
    %172 = vmatpush2.xpose.msra.mxu0 0.0
    %173 = vmatprep.subr.mxu0 0.0
    %174 = vmatpush2.xpose.msra.mxu0 0.0
    %175 = vmatprep.subr.mxu0 0.0
    %176 = vmatpush2.xpose.msra.mxu0 0.0
    %177 = vmatprep.subr.mxu0 0.0
    %178 = vmatpush2.xpose.msra.mxu0 0.0
    %179 = vmatprep.subr.mxu0 0.0
    %180 = vmatpush2.xpose.msra.mxu0 0.0
    %181 = vmatprep.subr.mxu0 0.0
    %182 = vmatpush2.xpose.msra.mxu0 0.0
    %183 = vmatprep.mubr.f32.mxu0 0.0
    %184 = vmatmul.mubr.f32.gmra.mxu0 %v108
    %v185 = vpop.f32.mrf.mxu0
    %v186 = vadd.f32 0.0, %v185
    %v187 = vpop.f32.mrf.mxu0
    %188 = vmatprep.mubr.f32.mxu0 0.0
    %189 = vmatmul.mubr.f32.gmra.mxu0 %v111
    %v190 = vpop.f32.mrf.mxu0
    %v191 = vadd.f32 0.0, %v190
    %v192 = vpop.f32.mrf.mxu0
    %193 = vdwg.mxu0
    %v194 = vld [vmem:[#allocation2] sm:$0xff]
    %v195 = vld [vmem:[#allocation2 + $0x8] sm:$0xff]
    %v196 = vadd.f32 %v186, %v100
    %v197 = vadd.f32 %v191, %v101
    %vm198 = vcmask 130048
    %v199 = vsel %vm198, %v196, -inf
    %200 = vmax.xlane.f32.xlu0 %v199
    %v201 = vpop.xlane.xlu0 %200
    %v202 = vsel %vm198, %v197, -inf
    %203 = vmax.xlane.f32.xlu0 %v202
    %v204 = vpop.xlane.xlu0 %203
    %v205 = vmax.f32 %v194, %v201
    %v206 = vmax.f32 %v195, %v204
    %vm207 = vcmask 7168
    %208 = vst.msk [vmem:[#allocation2] sm:$0xff] %vm207, %v205
    %209 = vst.msk [vmem:[#allocation2 + $0x8] sm:$0xff] %vm207, %v206
    %v210 = vld [vmem:[#allocation3] sm:$0xff]
    %v211 = vld [vmem:[#allocation3 + $0x8] sm:$0xff]
    %v212 = vmul.f32 %v186, %v96
    %v213 = vmul.f32 %v191, %v97
    %v214 = vsel %vm198, %v212, 0.0
    %215 = vadd.xlane.f32.xlu0 %v214
    %v216 = vpop.xlane.xlu0 %215
    %v217 = vsel %vm198, %v213, 0.0
    %218 = vadd.xlane.f32.xlu0 %v217
    %v219 = vpop.xlane.xlu0 %218
    %v220 = vadd.f32 %v210, %v216
    %v221 = vadd.f32 %v211, %v219
    %222 = vst.msk [vmem:[#allocation3] sm:$0xff] %vm207, %v220
    %223 = vst.msk [vmem:[#allocation3 + $0x8] sm:$0xff] %vm207, %v221
    %s224 = scalar_lea.vmem [#allocation4], 16
    %v225 = vld [vmem:[%s224] sm:$0xff]
    %v226 = vld [vmem:[%s224 + $0x8] sm:$0xff]
    %s227 = scalar_lea.vmem [#allocation6], 16
    %v228 = vld [vmem:[%s227] sm:$0xff]
    %v229 = vld [vmem:[%s227 + $0x8] sm:$0xff]
    %v231 = vsel %vm106, %v225, 0
    %v234 = vsel %vm106, %v226, 0
    %v237 = vsel %vm106, %v228, 0
    %v240 = vsel %vm106, %v229, 0
    %242 = vmatprep.subr.mxu0 0.0
    %243 = vmatpush1.xpose.msra.mxu0 0.0
    %244 = vmatprep.subr.mxu0 0.0
    %245 = vmatpush1.xpose.msra.mxu0 0.0
    %246 = vmatprep.subr.mxu0 0.0
    %247 = vmatpush1.xpose.msra.mxu0 0.0
    %248 = vmatprep.subr.mxu0 0.0
    %249 = vmatpush1.xpose.msra.mxu0 0.0
    %250 = vmatprep.subr.mxu0 0.0
    %251 = vmatpush1.xpose.msra.mxu0 0.0
    %252 = vmatprep.subr.mxu0 0.0
    %253 = vmatpush1.xpose.msra.mxu0 0.0
    %254 = vmatprep.subr.mxu0 0.0
    %255 = vmatpush1.xpose.msra.mxu0 0.0
    %256 = vmatprep.subr.mxu0 0.0
    %257 = vmatpush1.xpose.msra.mxu0 0.0
    %258 = vmatprep.subr.mxu0 0.0
    %259 = vmatpush1.xpose.msra.mxu0 0.0
    %260 = vmatprep.subr.mxu0 0.0
    %261 = vmatpush1.xpose.msra.mxu0 0.0
    %262 = vmatprep.subr.mxu0 0.0
    %263 = vmatpush1.xpose.msra.mxu0 0.0
    %264 = vmatprep.subr.mxu0 0.0
    %265 = vmatpush1.xpose.msra.mxu0 0.0
    %266 = vmatprep.subr.mxu0 0.0
    %267 = vmatpush1.xpose.msra.mxu0 0.0
    %268 = vmatprep.subr.mxu0 0.0
    %269 = vmatpush1.xpose.msra.mxu0 0.0
    %270 = vmatprep.subr.mxu0 0.0
    %271 = vmatpush1.xpose.msra.mxu0 %v240
    %272 = vmatprep.subr.mxu0 0.0
    %273 = vmatpush1.xpose.msra.mxu0 %v237
    %274 = vmatprep.subr.mxu0 0.0
    %275 = vmatpush2.xpose.msra.mxu0 0.0
    %276 = vmatprep.subr.mxu0 0.0
    %277 = vmatpush2.xpose.msra.mxu0 0.0
    %278 = vmatprep.subr.mxu0 0.0
    %279 = vmatpush2.xpose.msra.mxu0 0.0
    %280 = vmatprep.subr.mxu0 0.0
    %281 = vmatpush2.xpose.msra.mxu0 0.0
    %282 = vmatprep.subr.mxu0 0.0
    %283 = vmatpush2.xpose.msra.mxu0 0.0
    %284 = vmatprep.subr.mxu0 0.0
    %285 = vmatpush2.xpose.msra.mxu0 0.0
    %286 = vmatprep.subr.mxu0 0.0
    %287 = vmatpush2.xpose.msra.mxu0 0.0
    %288 = vmatprep.subr.mxu0 0.0
    %289 = vmatpush2.xpose.msra.mxu0 0.0
    %290 = vmatprep.subr.mxu0 0.0
    %291 = vmatpush2.xpose.msra.mxu0 0.0
    %292 = vmatprep.subr.mxu0 0.0
    %293 = vmatpush2.xpose.msra.mxu0 0.0
    %294 = vmatprep.subr.mxu0 0.0
    %295 = vmatpush2.xpose.msra.mxu0 0.0
    %296 = vmatprep.subr.mxu0 0.0
    %297 = vmatpush2.xpose.msra.mxu0 0.0
    %298 = vmatprep.subr.mxu0 0.0
    %299 = vmatpush2.xpose.msra.mxu0 0.0
    %300 = vmatprep.subr.mxu0 0.0
    %301 = vmatpush2.xpose.msra.mxu0 0.0
    %302 = vmatprep.subr.mxu0 0.0
    %303 = vmatpush2.xpose.msra.mxu0 0.0
    %304 = vmatprep.subr.mxu0 0.0
    %305 = vmatpush2.xpose.msra.mxu0 0.0
    %306 = vmatprep.mubr.f32.mxu0 0.0
    %307 = vmatmul.mubr.f32.gmra.mxu0 %v231
    %v308 = vpop.f32.mrf.mxu0
    %v309 = vadd.f32 0.0, %v308
    %v310 = vpop.f32.mrf.mxu0
    %311 = vmatprep.mubr.f32.mxu0 0.0
    %312 = vmatmul.mubr.f32.gmra.mxu0 %v234
    %v313 = vpop.f32.mrf.mxu0
    %v314 = vadd.f32 0.0, %v313
    %v315 = vpop.f32.mrf.mxu0
    %316 = vdwg.mxu0
    %s317 = scalar_lea.vmem [#allocation2], 16
    %v318 = vld [vmem:[%s317] sm:$0xff]
    %v319 = vld [vmem:[%s317 + $0x8] sm:$0xff]
    %v320 = vadd.f32 %v309, %v100
    %v321 = vadd.f32 %v314, %v101
    %v322 = vsel %vm198, %v320, -inf
    %323 = vmax.xlane.f32.xlu0 %v322
    %v324 = vpop.xlane.xlu0 %323
    %v325 = vsel %vm198, %v321, -inf
    %326 = vmax.xlane.f32.xlu0 %v325
    %v327 = vpop.xlane.xlu0 %326
    %v328 = vmax.f32 %v318, %v324
    %v329 = vmax.f32 %v319, %v327
    %330 = vst.msk [vmem:[%s317] sm:$0xff] %vm207, %v328
    %331 = vst.msk [vmem:[%s317 + $0x8] sm:$0xff] %vm207, %v329
    %s332 = scalar_lea.vmem [#allocation3], 16
    %v333 = vld [vmem:[%s332] sm:$0xff]
    %v334 = vld [vmem:[%s332 + $0x8] sm:$0xff]
    %v335 = vmul.f32 %v309, %v96
    %v336 = vmul.f32 %v314, %v97
    %v337 = vsel %vm198, %v335, 0.0
    %338 = vadd.xlane.f32.xlu0 %v337
    %v339 = vpop.xlane.xlu0 %338
    %v340 = vsel %vm198, %v336, 0.0
    %341 = vadd.xlane.f32.xlu0 %v340
    %v342 = vpop.xlane.xlu0 %341
    %v343 = vadd.f32 %v333, %v339
    %v344 = vadd.f32 %v334, %v342
    %345 = vst.msk [vmem:[%s332] sm:$0xff] %vm207, %v343
    %346 = vst.msk [vmem:[%s332 + $0x8] sm:$0xff] %vm207, %v344
    %s347 = scalar_lea.vmem [#allocation4], 32
    %v348 = vld [vmem:[%s347] sm:$0xff]
    %v349 = vld [vmem:[%s347 + $0x8] sm:$0xff]
    %s350 = scalar_lea.vmem [#allocation6], 32
    %v351 = vld [vmem:[%s350] sm:$0xff]
    %v352 = vld [vmem:[%s350 + $0x8] sm:$0xff]
    %v354 = vsel %vm106, %v348, 0
    %v357 = vsel %vm106, %v349, 0
    %v360 = vsel %vm106, %v351, 0
    %v363 = vsel %vm106, %v352, 0
    %365 = vmatprep.subr.mxu0 0.0
    %366 = vmatpush1.xpose.msra.mxu0 0.0
    %367 = vmatprep.subr.mxu0 0.0
    %368 = vmatpush1.xpose.msra.mxu0 0.0
    %369 = vmatprep.subr.mxu0 0.0
    %370 = vmatpush1.xpose.msra.mxu0 0.0
    %371 = vmatprep.subr.mxu0 0.0
    %372 = vmatpush1.xpose.msra.mxu0 0.0
    %373 = vmatprep.subr.mxu0 0.0
    %374 = vmatpush1.xpose.msra.mxu0 0.0
    %375 = vmatprep.subr.mxu0 0.0
    %376 = vmatpush1.xpose.msra.mxu0 0.0
    %377 = vmatprep.subr.mxu0 0.0
    %378 = vmatpush1.xpose.msra.mxu0 0.0
    %379 = vmatprep.subr.mxu0 0.0
    %380 = vmatpush1.xpose.msra.mxu0 0.0
    %381 = vmatprep.subr.mxu0 0.0
    %382 = vmatpush1.xpose.msra.mxu0 0.0
    %383 = vmatprep.subr.mxu0 0.0
    %384 = vmatpush1.xpose.msra.mxu0 0.0
    %385 = vmatprep.subr.mxu0 0.0
    %386 = vmatpush1.xpose.msra.mxu0 0.0
    %387 = vmatprep.subr.mxu0 0.0
    %388 = vmatpush1.xpose.msra.mxu0 0.0
    %389 = vmatprep.subr.mxu0 0.0
    %390 = vmatpush1.xpose.msra.mxu0 0.0
    %391 = vmatprep.subr.mxu0 0.0
    %392 = vmatpush1.xpose.msra.mxu0 0.0
    %393 = vmatprep.subr.mxu0 0.0
    %394 = vmatpush1.xpose.msra.mxu0 %v363
    %395 = vmatprep.subr.mxu0 0.0
    %396 = vmatpush1.xpose.msra.mxu0 %v360
    %397 = vmatprep.subr.mxu0 0.0
    %398 = vmatpush2.xpose.msra.mxu0 0.0
    %399 = vmatprep.subr.mxu0 0.0
    %400 = vmatpush2.xpose.msra.mxu0 0.0
    %401 = vmatprep.subr.mxu0 0.0
    %402 = vmatpush2.xpose.msra.mxu0 0.0
    %403 = vmatprep.subr.mxu0 0.0
    %404 = vmatpush2.xpose.msra.mxu0 0.0
    %405 = vmatprep.subr.mxu0 0.0
    %406 = vmatpush2.xpose.msra.mxu0 0.0
    %407 = vmatprep.subr.mxu0 0.0
    %408 = vmatpush2.xpose.msra.mxu0 0.0
    %409 = vmatprep.subr.mxu0 0.0
    %410 = vmatpush2.xpose.msra.mxu0 0.0
    %411 = vmatprep.subr.mxu0 0.0
    %412 = vmatpush2.xpose.msra.mxu0 0.0
    %413 = vmatprep.subr.mxu0 0.0
    %414 = vmatpush2.xpose.msra.mxu0 0.0
    %415 = vmatprep.subr.mxu0 0.0
    %416 = vmatpush2.xpose.msra.mxu0 0.0
    %417 = vmatprep.subr.mxu0 0.0
    %418 = vmatpush2.xpose.msra.mxu0 0.0
    %419 = vmatprep.subr.mxu0 0.0
    %420 = vmatpush2.xpose.msra.mxu0 0.0
    %421 = vmatprep.subr.mxu0 0.0
    %422 = vmatpush2.xpose.msra.mxu0 0.0
    %423 = vmatprep.subr.mxu0 0.0
    %424 = vmatpush2.xpose.msra.mxu0 0.0
    %425 = vmatprep.subr.mxu0 0.0
    %426 = vmatpush2.xpose.msra.mxu0 0.0
    %427 = vmatprep.subr.mxu0 0.0
    %428 = vmatpush2.xpose.msra.mxu0 0.0
    %429 = vmatprep.mubr.f32.mxu0 0.0
    %430 = vmatmul.mubr.f32.gmra.mxu0 %v354
    %v431 = vpop.f32.mrf.mxu0
    %v432 = vadd.f32 0.0, %v431
    %v433 = vpop.f32.mrf.mxu0
    %434 = vmatprep.mubr.f32.mxu0 0.0
    %435 = vmatmul.mubr.f32.gmra.mxu0 %v357
    %v436 = vpop.f32.mrf.mxu0
    %v437 = vadd.f32 0.0, %v436
    %v438 = vpop.f32.mrf.mxu0
    %439 = vdwg.mxu0
    %s440 = scalar_lea.vmem [#allocation2], 32
    %v441 = vld [vmem:[%s440] sm:$0xff]
    %v442 = vld [vmem:[%s440 + $0x8] sm:$0xff]
    %v443 = vadd.f32 %v432, %v100
    %v444 = vadd.f32 %v437, %v101
    %v445 = vsel %vm198, %v443, -inf
    %446 = vmax.xlane.f32.xlu0 %v445
    %v447 = vpop.xlane.xlu0 %446
    %v448 = vsel %vm198, %v444, -inf
    %449 = vmax.xlane.f32.xlu0 %v448
    %v450 = vpop.xlane.xlu0 %449
    %v451 = vmax.f32 %v441, %v447
    %v452 = vmax.f32 %v442, %v450
    %453 = vst.msk [vmem:[%s440] sm:$0xff] %vm207, %v451
    %454 = vst.msk [vmem:[%s440 + $0x8] sm:$0xff] %vm207, %v452
    %s455 = scalar_lea.vmem [#allocation3], 32
    %v456 = vld [vmem:[%s455] sm:$0xff]
    %v457 = vld [vmem:[%s455 + $0x8] sm:$0xff]
    %v458 = vmul.f32 %v432, %v96
    %v459 = vmul.f32 %v437, %v97
    %v460 = vsel %vm198, %v458, 0.0
    %461 = vadd.xlane.f32.xlu0 %v460
    %v462 = vpop.xlane.xlu0 %461
    %v463 = vsel %vm198, %v459, 0.0
    %464 = vadd.xlane.f32.xlu0 %v463
    %v465 = vpop.xlane.xlu0 %464
    %v466 = vadd.f32 %v456, %v462
    %v467 = vadd.f32 %v457, %v465
    %468 = vst.msk [vmem:[%s455] sm:$0xff] %vm207, %v466
    %469 = vst.msk [vmem:[%s455 + $0x8] sm:$0xff] %vm207, %v467
    %s470 = scalar_lea.vmem [#allocation4], 48
    %v471 = vld [vmem:[%s470] sm:$0xff]
    %v472 = vld [vmem:[%s470 + $0x8] sm:$0xff]
    %s473 = scalar_lea.vmem [#allocation6], 48
    %v474 = vld [vmem:[%s473] sm:$0xff]
    %v475 = vld [vmem:[%s473 + $0x8] sm:$0xff]
    %v477 = vsel %vm106, %v471, 0
    %v480 = vsel %vm106, %v472, 0
    %v483 = vsel %vm106, %v474, 0
    %v486 = vsel %vm106, %v475, 0
    %488 = vmatprep.subr.mxu0 0.0
    %489 = vmatpush1.xpose.msra.mxu0 0.0
    %490 = vmatprep.subr.mxu0 0.0
    %491 = vmatpush1.xpose.msra.mxu0 0.0
    %492 = vmatprep.subr.mxu0 0.0
    %493 = vmatpush1.xpose.msra.mxu0 0.0
    %494 = vmatprep.subr.mxu0 0.0
    %495 = vmatpush1.xpose.msra.mxu0 0.0
    %496 = vmatprep.subr.mxu0 0.0
    %497 = vmatpush1.xpose.msra.mxu0 0.0
    %498 = vmatprep.subr.mxu0 0.0
    %499 = vmatpush1.xpose.msra.mxu0 0.0
    %500 = vmatprep.subr.mxu0 0.0
    %501 = vmatpush1.xpose.msra.mxu0 0.0
    %502 = vmatprep.subr.mxu0 0.0
    %503 = vmatpush1.xpose.msra.mxu0 0.0
    %504 = vmatprep.subr.mxu0 0.0
    %505 = vmatpush1.xpose.msra.mxu0 0.0
    %506 = vmatprep.subr.mxu0 0.0
    %507 = vmatpush1.xpose.msra.mxu0 0.0
    %508 = vmatprep.subr.mxu0 0.0
    %509 = vmatpush1.xpose.msra.mxu0 0.0
    %510 = vmatprep.subr.mxu0 0.0
    %511 = vmatpush1.xpose.msra.mxu0 0.0
    %512 = vmatprep.subr.mxu0 0.0
    %513 = vmatpush1.xpose.msra.mxu0 0.0
    %514 = vmatprep.subr.mxu0 0.0
    %515 = vmatpush1.xpose.msra.mxu0 0.0
    %516 = vmatprep.subr.mxu0 0.0
    %517 = vmatpush1.xpose.msra.mxu0 %v486
    %518 = vmatprep.subr.mxu0 0.0
    %519 = vmatpush1.xpose.msra.mxu0 %v483
    %520 = vmatprep.subr.mxu0 0.0
    %521 = vmatpush2.xpose.msra.mxu0 0.0
    %522 = vmatprep.subr.mxu0 0.0
    %523 = vmatpush2.xpose.msra.mxu0 0.0
    %524 = vmatprep.subr.mxu0 0.0
    %525 = vmatpush2.xpose.msra.mxu0 0.0
    %526 = vmatprep.subr.mxu0 0.0
    %527 = vmatpush2.xpose.msra.mxu0 0.0
    %528 = vmatprep.subr.mxu0 0.0
    %529 = vmatpush2.xpose.msra.mxu0 0.0
    %530 = vmatprep.subr.mxu0 0.0
    %531 = vmatpush2.xpose.msra.mxu0 0.0
    %532 = vmatprep.subr.mxu0 0.0
    %533 = vmatpush2.xpose.msra.mxu0 0.0
    %534 = vmatprep.subr.mxu0 0.0
    %535 = vmatpush2.xpose.msra.mxu0 0.0
    %536 = vmatprep.subr.mxu0 0.0
    %537 = vmatpush2.xpose.msra.mxu0 0.0
    %538 = vmatprep.subr.mxu0 0.0
    %539 = vmatpush2.xpose.msra.mxu0 0.0
    %540 = vmatprep.subr.mxu0 0.0
    %541 = vmatpush2.xpose.msra.mxu0 0.0
    %542 = vmatprep.subr.mxu0 0.0
    %543 = vmatpush2.xpose.msra.mxu0 0.0
    %544 = vmatprep.subr.mxu0 0.0
    %545 = vmatpush2.xpose.msra.mxu0 0.0
    %546 = vmatprep.subr.mxu0 0.0
    %547 = vmatpush2.xpose.msra.mxu0 0.0
    %548 = vmatprep.subr.mxu0 0.0
    %549 = vmatpush2.xpose.msra.mxu0 0.0
    %550 = vmatprep.subr.mxu0 0.0
    %551 = vmatpush2.xpose.msra.mxu0 0.0
    %552 = vmatprep.mubr.f32.mxu0 0.0
    %553 = vmatmul.mubr.f32.gmra.mxu0 %v477
    %v554 = vpop.f32.mrf.mxu0
    %v555 = vadd.f32 0.0, %v554
    %v556 = vpop.f32.mrf.mxu0
    %557 = vmatprep.mubr.f32.mxu0 0.0
    %558 = vmatmul.mubr.f32.gmra.mxu0 %v480
    %v559 = vpop.f32.mrf.mxu0
    %v560 = vadd.f32 0.0, %v559
    %v561 = vpop.f32.mrf.mxu0
    %562 = vdwg.mxu0
    %s563 = scalar_lea.vmem [#allocation2], 48
    %v564 = vld [vmem:[%s563] sm:$0xff]
    %v565 = vld [vmem:[%s563 + $0x8] sm:$0xff]
    %v566 = vadd.f32 %v555, %v100
    %v567 = vadd.f32 %v560, %v101
    %v568 = vsel %vm198, %v566, -inf
    %569 = vmax.xlane.f32.xlu0 %v568
    %v570 = vpop.xlane.xlu0 %569
    %v571 = vsel %vm198, %v567, -inf
    %572 = vmax.xlane.f32.xlu0 %v571
    %v573 = vpop.xlane.xlu0 %572
    %v574 = vmax.f32 %v564, %v570
    %v575 = vmax.f32 %v565, %v573
    %576 = vst.msk [vmem:[%s563] sm:$0xff] %vm207, %v574
    %577 = vst.msk [vmem:[%s563 + $0x8] sm:$0xff] %vm207, %v575
    %s578 = scalar_lea.vmem [#allocation3], 48
    %v579 = vld [vmem:[%s578] sm:$0xff]
    %v580 = vld [vmem:[%s578 + $0x8] sm:$0xff]
    %v581 = vmul.f32 %v555, %v96
    %v582 = vmul.f32 %v560, %v97
    %v583 = vsel %vm198, %v581, 0.0
    %584 = vadd.xlane.f32.xlu0 %v583
    %v585 = vpop.xlane.xlu0 %584
    %v586 = vsel %vm198, %v582, 0.0
    %587 = vadd.xlane.f32.xlu0 %v586
    %v588 = vpop.xlane.xlu0 %587
    %v589 = vadd.f32 %v579, %v585
    %v590 = vadd.f32 %v580, %v588
    %591 = vst.msk [vmem:[%s578] sm:$0xff] %vm207, %v589
    %592 = vst.msk [vmem:[%s578 + $0x8] sm:$0xff] %vm207, %v590
    %s593 = scalar_lea.vmem [#allocation4], 64
    %v594 = vld [vmem:[%s593] sm:$0xff]
    %v595 = vld [vmem:[%s593 + $0x8] sm:$0xff]
    %s596 = scalar_lea.vmem [#allocation6], 64
    %v597 = vld [vmem:[%s596] sm:$0xff]
    %v598 = vld [vmem:[%s596 + $0x8] sm:$0xff]
    %v600 = vsel %vm106, %v594, 0
    %v603 = vsel %vm106, %v595, 0
    %v606 = vsel %vm106, %v597, 0
    %v609 = vsel %vm106, %v598, 0
    %611 = vmatprep.subr.mxu0 0.0
    %612 = vmatpush1.xpose.msra.mxu0 0.0
    %613 = vmatprep.subr.mxu0 0.0
    %614 = vmatpush1.xpose.msra.mxu0 0.0
    %615 = vmatprep.subr.mxu0 0.0
    %616 = vmatpush1.xpose.msra.mxu0 0.0
    %617 = vmatprep.subr.mxu0 0.0
    %618 = vmatpush1.xpose.msra.mxu0 0.0
    %619 = vmatprep.subr.mxu0 0.0
    %620 = vmatpush1.xpose.msra.mxu0 0.0
    %621 = vmatprep.subr.mxu0 0.0
    %622 = vmatpush1.xpose.msra.mxu0 0.0
    %623 = vmatprep.subr.mxu0 0.0
    %624 = vmatpush1.xpose.msra.mxu0 0.0
    %625 = vmatprep.subr.mxu0 0.0
    %626 = vmatpush1.xpose.msra.mxu0 0.0
    %627 = vmatprep.subr.mxu0 0.0
    %628 = vmatpush1.xpose.msra.mxu0 0.0
    %629 = vmatprep.subr.mxu0 0.0
    %630 = vmatpush1.xpose.msra.mxu0 0.0
    %631 = vmatprep.subr.mxu0 0.0
    %632 = vmatpush1.xpose.msra.mxu0 0.0
    %633 = vmatprep.subr.mxu0 0.0
    %634 = vmatpush1.xpose.msra.mxu0 0.0
    %635 = vmatprep.subr.mxu0 0.0
    %636 = vmatpush1.xpose.msra.mxu0 0.0
    %637 = vmatprep.subr.mxu0 0.0
    %638 = vmatpush1.xpose.msra.mxu0 0.0
    %639 = vmatprep.subr.mxu0 0.0
    %640 = vmatpush1.xpose.msra.mxu0 %v609
    %641 = vmatprep.subr.mxu0 0.0
    %642 = vmatpush1.xpose.msra.mxu0 %v606
    %643 = vmatprep.subr.mxu0 0.0
    %644 = vmatpush2.xpose.msra.mxu0 0.0
    %645 = vmatprep.subr.mxu0 0.0
    %646 = vmatpush2.xpose.msra.mxu0 0.0
    %647 = vmatprep.subr.mxu0 0.0
    %648 = vmatpush2.xpose.msra.mxu0 0.0
    %649 = vmatprep.subr.mxu0 0.0
    %650 = vmatpush2.xpose.msra.mxu0 0.0
    %651 = vmatprep.subr.mxu0 0.0
    %652 = vmatpush2.xpose.msra.mxu0 0.0
    %653 = vmatprep.subr.mxu0 0.0
    %654 = vmatpush2.xpose.msra.mxu0 0.0
    %655 = vmatprep.subr.mxu0 0.0
    %656 = vmatpush2.xpose.msra.mxu0 0.0
    %657 = vmatprep.subr.mxu0 0.0
    %658 = vmatpush2.xpose.msra.mxu0 0.0
    %659 = vmatprep.subr.mxu0 0.0
    %660 = vmatpush2.xpose.msra.mxu0 0.0
    %661 = vmatprep.subr.mxu0 0.0
    %662 = vmatpush2.xpose.msra.mxu0 0.0
    %663 = vmatprep.subr.mxu0 0.0
    %664 = vmatpush2.xpose.msra.mxu0 0.0
    %665 = vmatprep.subr.mxu0 0.0
    %666 = vmatpush2.xpose.msra.mxu0 0.0
    %667 = vmatprep.subr.mxu0 0.0
    %668 = vmatpush2.xpose.msra.mxu0 0.0
    %669 = vmatprep.subr.mxu0 0.0
    %670 = vmatpush2.xpose.msra.mxu0 0.0
    %671 = vmatprep.subr.mxu0 0.0
    %672 = vmatpush2.xpose.msra.mxu0 0.0
    %673 = vmatprep.subr.mxu0 0.0
    %674 = vmatpush2.xpose.msra.mxu0 0.0
    %675 = vmatprep.mubr.f32.mxu0 0.0
    %676 = vmatmul.mubr.f32.gmra.mxu0 %v600
    %v677 = vpop.f32.mrf.mxu0
    %v678 = vadd.f32 0.0, %v677
    %v679 = vpop.f32.mrf.mxu0
    %680 = vmatprep.mubr.f32.mxu0 0.0
    %681 = vmatmul.mubr.f32.gmra.mxu0 %v603
    %v682 = vpop.f32.mrf.mxu0
    %v683 = vadd.f32 0.0, %v682
    %v684 = vpop.f32.mrf.mxu0
    %685 = vdwg.mxu0
    %s686 = scalar_lea.vmem [#allocation2], 64
    %v687 = vld [vmem:[%s686] sm:$0xff]
    %v688 = vld [vmem:[%s686 + $0x8] sm:$0xff]
    %v689 = vadd.f32 %v678, %v100
    %v690 = vadd.f32 %v683, %v101
    %v691 = vsel %vm198, %v689, -inf
    %692 = vmax.xlane.f32.xlu0 %v691
    %v693 = vpop.xlane.xlu0 %692
    %v694 = vsel %vm198, %v690, -inf
    %695 = vmax.xlane.f32.xlu0 %v694
    %v696 = vpop.xlane.xlu0 %695
    %v697 = vmax.f32 %v687, %v693
    %v698 = vmax.f32 %v688, %v696
    %699 = vst.msk [vmem:[%s686] sm:$0xff] %vm207, %v697
    %700 = vst.msk [vmem:[%s686 + $0x8] sm:$0xff] %vm207, %v698
    %s701 = scalar_lea.vmem [#allocation3], 64
    %v702 = vld [vmem:[%s701] sm:$0xff]
    %v703 = vld [vmem:[%s701 + $0x8] sm:$0xff]
    %v704 = vmul.f32 %v678, %v96
    %v705 = vmul.f32 %v683, %v97
    %v706 = vsel %vm198, %v704, 0.0
    %707 = vadd.xlane.f32.xlu0 %v706
    %v708 = vpop.xlane.xlu0 %707
    %v709 = vsel %vm198, %v705, 0.0
    %710 = vadd.xlane.f32.xlu0 %v709
    %v711 = vpop.xlane.xlu0 %710
    %v712 = vadd.f32 %v702, %v708
    %v713 = vadd.f32 %v703, %v711
    %714 = vst.msk [vmem:[%s701] sm:$0xff] %vm207, %v712
    %715 = vst.msk [vmem:[%s701 + $0x8] sm:$0xff] %vm207, %v713
    %s716 = scalar_lea.vmem [#allocation4], 80
    %v717 = vld [vmem:[%s716] sm:$0xff]
    %v718 = vld [vmem:[%s716 + $0x8] sm:$0xff]
    %s719 = scalar_lea.vmem [#allocation6], 80
    %v720 = vld [vmem:[%s719] sm:$0xff]
    %v721 = vld [vmem:[%s719 + $0x8] sm:$0xff]
    %v723 = vsel %vm106, %v717, 0
    %v726 = vsel %vm106, %v718, 0
    %v729 = vsel %vm106, %v720, 0
    %v732 = vsel %vm106, %v721, 0
    %734 = vmatprep.subr.mxu0 0.0
    %735 = vmatpush1.xpose.msra.mxu0 0.0
    %736 = vmatprep.subr.mxu0 0.0
    %737 = vmatpush1.xpose.msra.mxu0 0.0
    %738 = vmatprep.subr.mxu0 0.0
    %739 = vmatpush1.xpose.msra.mxu0 0.0
    %740 = vmatprep.subr.mxu0 0.0
    %741 = vmatpush1.xpose.msra.mxu0 0.0
    %742 = vmatprep.subr.mxu0 0.0
    %743 = vmatpush1.xpose.msra.mxu0 0.0
    %744 = vmatprep.subr.mxu0 0.0
    %745 = vmatpush1.xpose.msra.mxu0 0.0
    %746 = vmatprep.subr.mxu0 0.0
    %747 = vmatpush1.xpose.msra.mxu0 0.0
    %748 = vmatprep.subr.mxu0 0.0
    %749 = vmatpush1.xpose.msra.mxu0 0.0
    %750 = vmatprep.subr.mxu0 0.0
    %751 = vmatpush1.xpose.msra.mxu0 0.0
    %752 = vmatprep.subr.mxu0 0.0
    %753 = vmatpush1.xpose.msra.mxu0 0.0
    %754 = vmatprep.subr.mxu0 0.0
    %755 = vmatpush1.xpose.msra.mxu0 0.0
    %756 = vmatprep.subr.mxu0 0.0
    %757 = vmatpush1.xpose.msra.mxu0 0.0
    %758 = vmatprep.subr.mxu0 0.0
    %759 = vmatpush1.xpose.msra.mxu0 0.0
    %760 = vmatprep.subr.mxu0 0.0
    %761 = vmatpush1.xpose.msra.mxu0 0.0
    %762 = vmatprep.subr.mxu0 0.0
    %763 = vmatpush1.xpose.msra.mxu0 %v732
    %764 = vmatprep.subr.mxu0 0.0
    %765 = vmatpush1.xpose.msra.mxu0 %v729
    %766 = vmatprep.subr.mxu0 0.0
    %767 = vmatpush2.xpose.msra.mxu0 0.0
    %768 = vmatprep.subr.mxu0 0.0
    %769 = vmatpush2.xpose.msra.mxu0 0.0
    %770 = vmatprep.subr.mxu0 0.0
    %771 = vmatpush2.xpose.msra.mxu0 0.0
    %772 = vmatprep.subr.mxu0 0.0
    %773 = vmatpush2.xpose.msra.mxu0 0.0
    %774 = vmatprep.subr.mxu0 0.0
    %775 = vmatpush2.xpose.msra.mxu0 0.0
    %776 = vmatprep.subr.mxu0 0.0
    %777 = vmatpush2.xpose.msra.mxu0 0.0
    %778 = vmatprep.subr.mxu0 0.0
    %779 = vmatpush2.xpose.msra.mxu0 0.0
    %780 = vmatprep.subr.mxu0 0.0
    %781 = vmatpush2.xpose.msra.mxu0 0.0
    %782 = vmatprep.subr.mxu0 0.0
    %783 = vmatpush2.xpose.msra.mxu0 0.0
    %784 = vmatprep.subr.mxu0 0.0
    %785 = vmatpush2.xpose.msra.mxu0 0.0
    %786 = vmatprep.subr.mxu0 0.0
    %787 = vmatpush2.xpose.msra.mxu0 0.0
    %788 = vmatprep.subr.mxu0 0.0
    %789 = vmatpush2.xpose.msra.mxu0 0.0
    %790 = vmatprep.subr.mxu0 0.0
    %791 = vmatpush2.xpose.msra.mxu0 0.0
    %792 = vmatprep.subr.mxu0 0.0
    %793 = vmatpush2.xpose.msra.mxu0 0.0
    %794 = vmatprep.subr.mxu0 0.0
    %795 = vmatpush2.xpose.msra.mxu0 0.0
    %796 = vmatprep.subr.mxu0 0.0
    %797 = vmatpush2.xpose.msra.mxu0 0.0
    %798 = vmatprep.mubr.f32.mxu0 0.0
    %799 = vmatmul.mubr.f32.gmra.mxu0 %v723
    %v800 = vpop.f32.mrf.mxu0
    %v801 = vadd.f32 0.0, %v800
    %v802 = vpop.f32.mrf.mxu0
    %803 = vmatprep.mubr.f32.mxu0 0.0
    %804 = vmatmul.mubr.f32.gmra.mxu0 %v726
    %v805 = vpop.f32.mrf.mxu0
    %v806 = vadd.f32 0.0, %v805
    %v807 = vpop.f32.mrf.mxu0
    %808 = vdwg.mxu0
    %s809 = scalar_lea.vmem [#allocation2], 80
    %v810 = vld [vmem:[%s809] sm:$0xff]
    %v811 = vld [vmem:[%s809 + $0x8] sm:$0xff]
    %v812 = vadd.f32 %v801, %v100
    %v813 = vadd.f32 %v806, %v101
    %v814 = vsel %vm198, %v812, -inf
    %815 = vmax.xlane.f32.xlu0 %v814
    %v816 = vpop.xlane.xlu0 %815
    %v817 = vsel %vm198, %v813, -inf
    %818 = vmax.xlane.f32.xlu0 %v817
    %v819 = vpop.xlane.xlu0 %818
    %v820 = vmax.f32 %v810, %v816
    %v821 = vmax.f32 %v811, %v819
    %822 = vst.msk [vmem:[%s809] sm:$0xff] %vm207, %v820
    %823 = vst.msk [vmem:[%s809 + $0x8] sm:$0xff] %vm207, %v821
    %s824 = scalar_lea.vmem [#allocation3], 80
    %v825 = vld [vmem:[%s824] sm:$0xff]
    %v826 = vld [vmem:[%s824 + $0x8] sm:$0xff]
    %v827 = vmul.f32 %v801, %v96
    %v828 = vmul.f32 %v806, %v97
    %v829 = vsel %vm198, %v827, 0.0
    %830 = vadd.xlane.f32.xlu0 %v829
    %v831 = vpop.xlane.xlu0 %830
    %v832 = vsel %vm198, %v828, 0.0
    %833 = vadd.xlane.f32.xlu0 %v832
    %v834 = vpop.xlane.xlu0 %833
    %v835 = vadd.f32 %v825, %v831
    %v836 = vadd.f32 %v826, %v834
    %837 = vst.msk [vmem:[%s824] sm:$0xff] %vm207, %v835
    %838 = vst.msk [vmem:[%s824 + $0x8] sm:$0xff] %vm207, %v836
    %s839 = scalar_lea.vmem [#allocation4], 96
    %v840 = vld [vmem:[%s839] sm:$0xff]
    %v841 = vld [vmem:[%s839 + $0x8] sm:$0xff]
    %s842 = scalar_lea.vmem [#allocation6], 96
    %v843 = vld [vmem:[%s842] sm:$0xff]
    %v844 = vld [vmem:[%s842 + $0x8] sm:$0xff]
    %v846 = vsel %vm106, %v840, 0
    %v849 = vsel %vm106, %v841, 0
    %v852 = vsel %vm106, %v843, 0
    %v855 = vsel %vm106, %v844, 0
    %857 = vmatprep.subr.mxu0 0.0
    %858 = vmatpush1.xpose.msra.mxu0 0.0
    %859 = vmatprep.subr.mxu0 0.0
    %860 = vmatpush1.xpose.msra.mxu0 0.0
    %861 = vmatprep.subr.mxu0 0.0
    %862 = vmatpush1.xpose.msra.mxu0 0.0
    %863 = vmatprep.subr.mxu0 0.0
    %864 = vmatpush1.xpose.msra.mxu0 0.0
    %865 = vmatprep.subr.mxu0 0.0
    %866 = vmatpush1.xpose.msra.mxu0 0.0
    %867 = vmatprep.subr.mxu0 0.0
    %868 = vmatpush1.xpose.msra.mxu0 0.0
    %869 = vmatprep.subr.mxu0 0.0
    %870 = vmatpush1.xpose.msra.mxu0 0.0
    %871 = vmatprep.subr.mxu0 0.0
    %872 = vmatpush1.xpose.msra.mxu0 0.0
    %873 = vmatprep.subr.mxu0 0.0
    %874 = vmatpush1.xpose.msra.mxu0 0.0
    %875 = vmatprep.subr.mxu0 0.0
    %876 = vmatpush1.xpose.msra.mxu0 0.0
    %877 = vmatprep.subr.mxu0 0.0
    %878 = vmatpush1.xpose.msra.mxu0 0.0
    %879 = vmatprep.subr.mxu0 0.0
    %880 = vmatpush1.xpose.msra.mxu0 0.0
    %881 = vmatprep.subr.mxu0 0.0
    %882 = vmatpush1.xpose.msra.mxu0 0.0
    %883 = vmatprep.subr.mxu0 0.0
    %884 = vmatpush1.xpose.msra.mxu0 0.0
    %885 = vmatprep.subr.mxu0 0.0
    %886 = vmatpush1.xpose.msra.mxu0 %v855
    %887 = vmatprep.subr.mxu0 0.0
    %888 = vmatpush1.xpose.msra.mxu0 %v852
    %889 = vmatprep.subr.mxu0 0.0
    %890 = vmatpush2.xpose.msra.mxu0 0.0
    %891 = vmatprep.subr.mxu0 0.0
    %892 = vmatpush2.xpose.msra.mxu0 0.0
    %893 = vmatprep.subr.mxu0 0.0
    %894 = vmatpush2.xpose.msra.mxu0 0.0
    %895 = vmatprep.subr.mxu0 0.0
    %896 = vmatpush2.xpose.msra.mxu0 0.0
    %897 = vmatprep.subr.mxu0 0.0
    %898 = vmatpush2.xpose.msra.mxu0 0.0
    %899 = vmatprep.subr.mxu0 0.0
    %900 = vmatpush2.xpose.msra.mxu0 0.0
    %901 = vmatprep.subr.mxu0 0.0
    %902 = vmatpush2.xpose.msra.mxu0 0.0
    %903 = vmatprep.subr.mxu0 0.0
    %904 = vmatpush2.xpose.msra.mxu0 0.0
    %905 = vmatprep.subr.mxu0 0.0
    %906 = vmatpush2.xpose.msra.mxu0 0.0
    %907 = vmatprep.subr.mxu0 0.0
    %908 = vmatpush2.xpose.msra.mxu0 0.0
    %909 = vmatprep.subr.mxu0 0.0
    %910 = vmatpush2.xpose.msra.mxu0 0.0
    %911 = vmatprep.subr.mxu0 0.0
    %912 = vmatpush2.xpose.msra.mxu0 0.0
    %913 = vmatprep.subr.mxu0 0.0
    %914 = vmatpush2.xpose.msra.mxu0 0.0
    %915 = vmatprep.subr.mxu0 0.0
    %916 = vmatpush2.xpose.msra.mxu0 0.0
    %917 = vmatprep.subr.mxu0 0.0
    %918 = vmatpush2.xpose.msra.mxu0 0.0
    %919 = vmatprep.subr.mxu0 0.0
    %920 = vmatpush2.xpose.msra.mxu0 0.0
    %921 = vmatprep.mubr.f32.mxu0 0.0
    %922 = vmatmul.mubr.f32.gmra.mxu0 %v846
    %v923 = vpop.f32.mrf.mxu0
    %v924 = vadd.f32 0.0, %v923
    %v925 = vpop.f32.mrf.mxu0
    %926 = vmatprep.mubr.f32.mxu0 0.0
    %927 = vmatmul.mubr.f32.gmra.mxu0 %v849
    %v928 = vpop.f32.mrf.mxu0
    %v929 = vadd.f32 0.0, %v928
    %v930 = vpop.f32.mrf.mxu0
    %931 = vdwg.mxu0
    %s932 = scalar_lea.vmem [#allocation2], 96
    %v933 = vld [vmem:[%s932] sm:$0xff]
    %v934 = vld [vmem:[%s932 + $0x8] sm:$0xff]
    %v935 = vadd.f32 %v924, %v100
    %v936 = vadd.f32 %v929, %v101
    %v937 = vsel %vm198, %v935, -inf
    %938 = vmax.xlane.f32.xlu0 %v937
    %v939 = vpop.xlane.xlu0 %938
    %v940 = vsel %vm198, %v936, -inf
    %941 = vmax.xlane.f32.xlu0 %v940
    %v942 = vpop.xlane.xlu0 %941
    %v943 = vmax.f32 %v933, %v939
    %v944 = vmax.f32 %v934, %v942
    %945 = vst.msk [vmem:[%s932] sm:$0xff] %vm207, %v943
    %946 = vst.msk [vmem:[%s932 + $0x8] sm:$0xff] %vm207, %v944
    %s947 = scalar_lea.vmem [#allocation3], 96
    %v948 = vld [vmem:[%s947] sm:$0xff]
    %v949 = vld [vmem:[%s947 + $0x8] sm:$0xff]
    %v950 = vmul.f32 %v924, %v96
    %v951 = vmul.f32 %v929, %v97
    %v952 = vsel %vm198, %v950, 0.0
    %953 = vadd.xlane.f32.xlu0 %v952
    %v954 = vpop.xlane.xlu0 %953
    %v955 = vsel %vm198, %v951, 0.0
    %956 = vadd.xlane.f32.xlu0 %v955
    %v957 = vpop.xlane.xlu0 %956
    %v958 = vadd.f32 %v948, %v954
    %v959 = vadd.f32 %v949, %v957
    %960 = vst.msk [vmem:[%s947] sm:$0xff] %vm207, %v958
    %961 = vst.msk [vmem:[%s947 + $0x8] sm:$0xff] %vm207, %v959
    %s962 = scalar_lea.vmem [#allocation4], 112
    %v963 = vld [vmem:[%s962] sm:$0xff]
    %v964 = vld [vmem:[%s962 + $0x8] sm:$0xff]
    %s965 = scalar_lea.vmem [#allocation6], 112
    %v966 = vld [vmem:[%s965] sm:$0xff]
    %v967 = vld [vmem:[%s965 + $0x8] sm:$0xff]
    %v969 = vsel %vm106, %v963, 0
    %v972 = vsel %vm106, %v964, 0
    %v975 = vsel %vm106, %v966, 0
    %v978 = vsel %vm106, %v967, 0
    %980 = vmatprep.subr.mxu0 0.0
    %981 = vmatpush1.xpose.msra.mxu0 0.0
    %982 = vmatprep.subr.mxu0 0.0
    %983 = vmatpush1.xpose.msra.mxu0 0.0
    %984 = vmatprep.subr.mxu0 0.0
    %985 = vmatpush1.xpose.msra.mxu0 0.0
    %986 = vmatprep.subr.mxu0 0.0
    %987 = vmatpush1.xpose.msra.mxu0 0.0
    %988 = vmatprep.subr.mxu0 0.0
    %989 = vmatpush1.xpose.msra.mxu0 0.0
    %990 = vmatprep.subr.mxu0 0.0
    %991 = vmatpush1.xpose.msra.mxu0 0.0
    %992 = vmatprep.subr.mxu0 0.0
    %993 = vmatpush1.xpose.msra.mxu0 0.0
    %994 = vmatprep.subr.mxu0 0.0
    %995 = vmatpush1.xpose.msra.mxu0 0.0
    %996 = vmatprep.subr.mxu0 0.0
    %997 = vmatpush1.xpose.msra.mxu0 0.0
    %998 = vmatprep.subr.mxu0 0.0
    %999 = vmatpush1.xpose.msra.mxu0 0.0
    %1000 = vmatprep.subr.mxu0 0.0
    %1001 = vmatpush1.xpose.msra.mxu0 0.0
    %1002 = vmatprep.subr.mxu0 0.0
    %1003 = vmatpush1.xpose.msra.mxu0 0.0
    %1004 = vmatprep.subr.mxu0 0.0
    %1005 = vmatpush1.xpose.msra.mxu0 0.0
    %1006 = vmatprep.subr.mxu0 0.0
    %1007 = vmatpush1.xpose.msra.mxu0 0.0
    %1008 = vmatprep.subr.mxu0 0.0
    %1009 = vmatpush1.xpose.msra.mxu0 %v978
    %1010 = vmatprep.subr.mxu0 0.0
    %1011 = vmatpush1.xpose.msra.mxu0 %v975
    %1012 = vmatprep.subr.mxu0 0.0
    %1013 = vmatpush2.xpose.msra.mxu0 0.0
    %1014 = vmatprep.subr.mxu0 0.0
    %1015 = vmatpush2.xpose.msra.mxu0 0.0
    %1016 = vmatprep.subr.mxu0 0.0
    %1017 = vmatpush2.xpose.msra.mxu0 0.0
    %1018 = vmatprep.subr.mxu0 0.0
    %1019 = vmatpush2.xpose.msra.mxu0 0.0
    %1020 = vmatprep.subr.mxu0 0.0
    %1021 = vmatpush2.xpose.msra.mxu0 0.0
    %1022 = vmatprep.subr.mxu0 0.0
    %1023 = vmatpush2.xpose.msra.mxu0 0.0
    %1024 = vmatprep.subr.mxu0 0.0
    %1025 = vmatpush2.xpose.msra.mxu0 0.0
    %1026 = vmatprep.subr.mxu0 0.0
    %1027 = vmatpush2.xpose.msra.mxu0 0.0
    %1028 = vmatprep.subr.mxu0 0.0
    %1029 = vmatpush2.xpose.msra.mxu0 0.0
    %1030 = vmatprep.subr.mxu0 0.0
    %1031 = vmatpush2.xpose.msra.mxu0 0.0
    %1032 = vmatprep.subr.mxu0 0.0
    %1033 = vmatpush2.xpose.msra.mxu0 0.0
    %1034 = vmatprep.subr.mxu0 0.0
    %1035 = vmatpush2.xpose.msra.mxu0 0.0
    %1036 = vmatprep.subr.mxu0 0.0
    %1037 = vmatpush2.xpose.msra.mxu0 0.0
    %1038 = vmatprep.subr.mxu0 0.0
    %1039 = vmatpush2.xpose.msra.mxu0 0.0
    %1040 = vmatprep.subr.mxu0 0.0
    %1041 = vmatpush2.xpose.msra.mxu0 0.0
    %1042 = vmatprep.subr.mxu0 0.0
    %1043 = vmatpush2.xpose.msra.mxu0 0.0
    %1044 = vmatprep.mubr.f32.mxu0 0.0
    %1045 = vmatmul.mubr.f32.gmra.mxu0 %v969
    %v1046 = vpop.f32.mrf.mxu0
    %v1047 = vadd.f32 0.0, %v1046
    %v1048 = vpop.f32.mrf.mxu0
    %1049 = vmatprep.mubr.f32.mxu0 0.0
    %1050 = vmatmul.mubr.f32.gmra.mxu0 %v972
    %v1051 = vpop.f32.mrf.mxu0
    %v1052 = vadd.f32 0.0, %v1051
    %v1053 = vpop.f32.mrf.mxu0
    %1054 = vdwg.mxu0
    %s1055 = scalar_lea.vmem [#allocation2], 112
    %v1056 = vld [vmem:[%s1055] sm:$0xff]
    %v1057 = vld [vmem:[%s1055 + $0x8] sm:$0xff]
    %v1058 = vadd.f32 %v1047, %v100
    %v1059 = vadd.f32 %v1052, %v101
    %v1060 = vsel %vm198, %v1058, -inf
    %1061 = vmax.xlane.f32.xlu0 %v1060
    %v1062 = vpop.xlane.xlu0 %1061
    %v1063 = vsel %vm198, %v1059, -inf
    %1064 = vmax.xlane.f32.xlu0 %v1063
    %v1065 = vpop.xlane.xlu0 %1064
    %v1066 = vmax.f32 %v1056, %v1062
    %v1067 = vmax.f32 %v1057, %v1065
    %1068 = vst.msk [vmem:[%s1055] sm:$0xff] %vm207, %v1066
    %1069 = vst.msk [vmem:[%s1055 + $0x8] sm:$0xff] %vm207, %v1067
    %s1070 = scalar_lea.vmem [#allocation3], 112
    %v1071 = vld [vmem:[%s1070] sm:$0xff]
    %v1072 = vld [vmem:[%s1070 + $0x8] sm:$0xff]
    %v1073 = vmul.f32 %v1047, %v96
    %v1074 = vmul.f32 %v1052, %v97
    %v1075 = vsel %vm198, %v1073, 0.0
    %1076 = vadd.xlane.f32.xlu0 %v1075
    %v1077 = vpop.xlane.xlu0 %1076
    %v1078 = vsel %vm198, %v1074, 0.0
    %1079 = vadd.xlane.f32.xlu0 %v1078
    %v1080 = vpop.xlane.xlu0 %1079
    %v1081 = vadd.f32 %v1071, %v1077
    %v1082 = vadd.f32 %v1072, %v1080
    %1083 = vst.msk [vmem:[%s1070] sm:$0xff] %vm207, %v1081
    %1084 = vst.msk [vmem:[%s1070 + $0x8] sm:$0xff] %vm207, %v1082
    // Predicated region
    $region30: #{tpu_custom_call.1} parent=1 // pred_check
      %p1085 = pneg %p55
    $region31: #{tpu_custom_call.1} parent=1 // pred_check_branch
      %1087 = sbr.rel (%p1085) target = $region33
    $region32: #{tpu_custom_call.1} parent=1 // pred_region
      %v1088 = vld [vmem:[#allocation2] sm:$0xff]
      %v1089 = vld [vmem:[#allocation2 + $0x8] sm:$0xff]
      %v1090 = vld [vmem:[#allocation2 + $0x10] sm:$0xff]
      %v1091 = vld [vmem:[#allocation2 + $0x18] sm:$0xff]
      %v1092 = vld [vmem:[#allocation2 + $0x20] sm:$0xff]
      %v1093 = vld [vmem:[#allocation2 + $0x28] sm:$0xff]
      %v1094 = vld [vmem:[#allocation2 + $0x30] sm:$0xff]
      %v1095 = vld [vmem:[#allocation2 + $0x38] sm:$0xff]
      %v1096 = vld [vmem:[#allocation2 + $0x40] sm:$0xff]
      %v1097 = vld [vmem:[#allocation2 + $0x48] sm:$0xff]
      %v1098 = vld [vmem:[#allocation2 + $0x50] sm:$0xff]
      %v1099 = vld [vmem:[#allocation2 + $0x58] sm:$0xff]
      %v1100 = vld [vmem:[#allocation2 + $0x60] sm:$0xff]
      %v1101 = vld [vmem:[#allocation2 + $0x68] sm:$0xff]
      %v1102 = vld [vmem:[#allocation2 + $0x70] sm:$0xff]
      %v1103 = vld [vmem:[#allocation2 + $0x78] sm:$0xff]
      %v1104 = vld [vmem:[#allocation3] sm:$0xff]
      %v1105 = vld [vmem:[#allocation3 + $0x8] sm:$0xff]
      %v1106 = vld [vmem:[#allocation3 + $0x10] sm:$0xff]
      %v1107 = vld [vmem:[#allocation3 + $0x18] sm:$0xff]
      %v1108 = vld [vmem:[#allocation3 + $0x20] sm:$0xff]
      %v1109 = vld [vmem:[#allocation3 + $0x28] sm:$0xff]
      %v1110 = vld [vmem:[#allocation3 + $0x30] sm:$0xff]
      %v1111 = vld [vmem:[#allocation3 + $0x38] sm:$0xff]
      %v1112 = vld [vmem:[#allocation3 + $0x40] sm:$0xff]
      %v1113 = vld [vmem:[#allocation3 + $0x48] sm:$0xff]
      %v1114 = vld [vmem:[#allocation3 + $0x50] sm:$0xff]
      %v1115 = vld [vmem:[#allocation3 + $0x58] sm:$0xff]
      %v1116 = vld [vmem:[#allocation3 + $0x60] sm:$0xff]
      %v1117 = vld [vmem:[#allocation3 + $0x68] sm:$0xff]
      %v1118 = vld [vmem:[#allocation3 + $0x70] sm:$0xff]
      %v1119 = vld [vmem:[#allocation3 + $0x78] sm:$0xff]
      %v1120 = vmul.f32 %v1104, 0.0625
      %v1121 = vmul.f32 %v1105, 0.0625
      %v1122 = vmul.f32 %v1106, 0.0625
      %v1123 = vmul.f32 %v1107, 0.0625
      %v1124 = vmul.f32 %v1108, 0.0625
      %v1125 = vmul.f32 %v1109, 0.0625
      %v1126 = vmul.f32 %v1110, 0.0625
      %v1127 = vmul.f32 %v1111, 0.0625
      %v1128 = vmul.f32 %v1112, 0.0625
      %v1129 = vmul.f32 %v1113, 0.0625
      %v1130 = vmul.f32 %v1114, 0.0625
      %v1131 = vmul.f32 %v1115, 0.0625
      %v1132 = vmul.f32 %v1116, 0.0625
      %v1133 = vmul.f32 %v1117, 0.0625
      %v1134 = vmul.f32 %v1118, 0.0625
      %v1135 = vmul.f32 %v1119, 0.0625
      %v1136 = vsub.f32 %v1088, %v1120
      %v1137 = vsub.f32 %v1089, %v1121
      %v1138 = vsub.f32 %v1090, %v1122
      %v1139 = vsub.f32 %v1091, %v1123
      %v1140 = vsub.f32 %v1092, %v1124
      %v1141 = vsub.f32 %v1093, %v1125
      %v1142 = vsub.f32 %v1094, %v1126
      %v1143 = vsub.f32 %v1095, %v1127
      %v1144 = vsub.f32 %v1096, %v1128
      %v1145 = vsub.f32 %v1097, %v1129
      %v1146 = vsub.f32 %v1098, %v1130
      %v1147 = vsub.f32 %v1099, %v1131
      %v1148 = vsub.f32 %v1100, %v1132
      %v1149 = vsub.f32 %v1101, %v1133
      %v1150 = vsub.f32 %v1102, %v1134
      %v1151 = vsub.f32 %v1103, %v1135
      %1152 = vst.msk [vmem:[%s3] sm:$0xff] %vm207, %v1136
      %1153 = vst.msk [vmem:[%s3 + $0x8] sm:$0xff] %vm207, %v1137
      %1154 = vst.msk [vmem:[%s3 + $0x10] sm:$0xff] %vm207, %v1138
      %1155 = vst.msk [vmem:[%s3 + $0x18] sm:$0xff] %vm207, %v1139
      %1156 = vst.msk [vmem:[%s3 + $0x20] sm:$0xff] %vm207, %v1140
      %1157 = vst.msk [vmem:[%s3 + $0x28] sm:$0xff] %vm207, %v1141
      %1158 = vst.msk [vmem:[%s3 + $0x30] sm:$0xff] %vm207, %v1142
      %1159 = vst.msk [vmem:[%s3 + $0x38] sm:$0xff] %vm207, %v1143
      %1160 = vst.msk [vmem:[%s3 + $0x40] sm:$0xff] %vm207, %v1144
      %1161 = vst.msk [vmem:[%s3 + $0x48] sm:$0xff] %vm207, %v1145
      %1162 = vst.msk [vmem:[%s3 + $0x50] sm:$0xff] %vm207, %v1146
      %1163 = vst.msk [vmem:[%s3 + $0x58] sm:$0xff] %vm207, %v1147
      %1164 = vst.msk [vmem:[%s3 + $0x60] sm:$0xff] %vm207, %v1148
      %1165 = vst.msk [vmem:[%s3 + $0x68] sm:$0xff] %vm207, %v1149
      %1166 = vst.msk [vmem:[%s3 + $0x70] sm:$0xff] %vm207, %v1150
      %1167 = vst.msk [vmem:[%s3 + $0x78] sm:$0xff] %vm207, %v1151
    $region33: #{tpu_custom_call.1} parent=1 // pred_fallthru
      _
    // Predicated region
    $region34: #{tpu_custom_call.1} parent=1 // pred_check
      _
    $region35: #{tpu_custom_call.1} parent=1 // pred_check_branch
      %1169 = sbr.rel (0) target = $region37
    $region36: #{tpu_custom_call.1} parent=1 // pred_region
      _
    $region37: #{tpu_custom_call.1} parent=1 // pred_fallthru
      _
    // Predicated region
    $region38: #{tpu_custom_call.1} parent=1 // pred_check
      _
    $region39: #{tpu_custom_call.1} parent=1 // pred_check_branch
      %1171 = sbr.rel (0) target = $region41
    $region40: #{tpu_custom_call.1} parent=1 // pred_region
      _
    $region41: #{tpu_custom_call.1} parent=1 // pred_fallthru
      _
    %1172 = vsyncpa [#allocation5], 1
    %1173 = vsyncpa [#allocation7], 1

</llo_original>
